<compile_context>
chip_gen: v6e
topology: v6e:2x2x1
jax: 0.10.0
libtpu: 0.0.40
codegen_flags: <defaults>
</compile_context>

<pallas_src>
import math
from functools import partial

import jax
import jax.numpy as jnp
from jax import lax
from jax.experimental import pallas as pl
from jax.experimental.pallas import tpu as pltpu


_MASK_VALUE = -1e30  # "minus infinity" for masked (padded) kv positions


def _flash_attn_kernel(q_ref, k_ref, v_ref, o_ref, m_sc, l_sc, acc_sc, qs_sc, *,
                       scale2, mm_dtype, kv_tile, t_actual):
    """One (head-block, q-tile, kv-tile) step of flash attention.

    Transposed-scores layout ([hb, tkv, tq]) so that:
      * QK : einsum('hcs,hct->hst', k, q)  == k^T @ q  (trans_a, MXU-native)
      * PV : einsum('hcs,hst->hct', v, p)  -- standard [M,K]x[K,N], no v relayout
    and the accumulator is already in the output layout [hb, ch, tq].
    """
    kv = pl.program_id(2)

    @pl.when(kv == 0)
    def _():
        m_sc[...] = jnp.full(m_sc.shape, -jnp.inf, dtype=m_sc.dtype)
        l_sc[...] = jnp.zeros(l_sc.shape, dtype=l_sc.dtype)
        acc_sc[...] = jnp.zeros(acc_sc.shape, dtype=acc_sc.dtype)
        # Hoisted q prep: the q block is resident for the whole kv sweep, so the
        # scale + cast happen once per (head-block, q-tile), not once per kv step.
        qs_sc[...] = (q_ref[...].astype(jnp.float32) * scale2).astype(mm_dtype)

    q = qs_sc[...]                          # [hb, ch, tq]  (pre-scaled, matmul dtype)
    k = k_ref[...].astype(mm_dtype)         # [hb, ch, tkv]
    v = v_ref[...].astype(mm_dtype)         # [hb, ch, tkv]

    # s[h, s', t] = sum_c k[h, c, s'] * q[h, c, t]  (== w[h, t, s'] transposed)
    s = jnp.einsum('hcs,hct->hst', k, q,
                   preferred_element_type=jnp.float32)    # [hb, tkv, tq] f32

    if t_actual is not None:
        # Sequence was padded to a multiple of 128: mask the padded kv rows.
        kv_pos = kv * kv_tile + lax.broadcasted_iota(jnp.int32, s.shape, 1)
        s = jnp.where(kv_pos < t_actual, s, _MASK_VALUE)

    # Online-softmax update (statistics in f32).
    m_prev = m_sc[...]                                            # [hb, 1, tq]
    m_new = jnp.maximum(m_prev, jnp.max(s, axis=1, keepdims=True))
    alpha = jnp.exp(m_prev - m_new)
    p = jnp.exp(s - m_new)                                        # [hb, tkv, tq]
    l_sc[...] = alpha * l_sc[...] + jnp.sum(p, axis=1, keepdims=True)
    # acc[h, c, t] += sum_s v[h, c, s] * p[h, s, t]  (standard MXU orientation).
    acc_sc[...] = alpha * acc_sc[...] + jnp.einsum(
        'hcs,hst->hct', v, p.astype(mm_dtype), preferred_element_type=jnp.float32)
    m_sc[...] = m_new

    @pl.when(kv == pl.num_programs(2) - 1)
    def _():
        l = l_sc[...]
        inv_l = pl.reciprocal(l, approx=True)     # EUP slot (nearly free)
        inv_l = inv_l * (2.0 - l * inv_l)         # 2 Newton steps -> f32 accuracy
        inv_l = inv_l * (2.0 - l * inv_l)
        # Accumulator is already [hb, ch, tq]: lane-dense store, no transpose.
        o_ref[...] = (acc_sc[...] * inv_l).astype(o_ref.dtype)


def _vmem_capacity_bytes():
    """Per-TensorCore VMEM capacity; falls back to the 64 MiB v7x floor."""
    try:
        cap = getattr(pltpu.get_tpu_info(), "vmem_capacity_bytes", None)
        if cap:
            return int(cap)
    except Exception:
        pass
    return 64 * 1024 * 1024


def _round_up(x, m):
    return ((x + m - 1) // m) * m


def _pick_tile(T, target):
    """Largest tile <= target that divides T and satisfies the 128-lane rule."""
    t = min(target, T)
    t -= t % 128
    if t <= 0:
        return T
    while T % t != 0:
        t -= 128
    return t


def _block_footprint(hb, ch, tq, tkv, in_bytes, mm_bytes, out_bytes):
    """Per-grid-step VMEM footprint estimate (double-buffered blocks + scratch
    + live score/exp temporaries), real dtype sizes."""
    blocks = 2 * hb * ch * (tq * in_bytes           # q block (x2 pipeline buffers)
                            + 2 * tkv * in_bytes    # k, v blocks
                            + tq * out_bytes)       # out block
    scratch = (hb * ch * tq * 4                     # f32 output accumulator
               + hb * ch * tq * mm_bytes            # pre-scaled q scratch
               + 2 * hb * 8 * tq * 4)               # m, l (sublane-padded)
    temps = hb * tkv * tq * (4 + 4 + mm_bytes)      # s, p (f32) + p cast for PV
    return blocks + scratch + temps


def _divisors_desc(n, cap):
    return [d for d in range(min(n, cap), 0, -1) if n % d == 0]


def _pick_heads_per_block(B, ch, tq, tkv, in_bytes, mm_bytes, out_bytes,
                          budget_bytes, n_q_tiles, max_hb=16):
    """Batch heads per grid step (amortize ~0.35us/step) within the VMEM budget,
    but keep >= 2 steps on the parallel grid axes so both v7x cores stay fed."""
    hb = 1
    for d in _divisors_desc(B, max_hb):
        if _block_footprint(d, ch, tq, tkv, in_bytes, mm_bytes, out_bytes) <= budget_bytes:
            hb = d
            break
    while hb > 1 and (B // hb) * n_q_tiles < 2:
        smaller = _divisors_desc(B, hb - 1)
        hb = smaller[0] if smaller else 1
    return hb


def qkv_attention_legacy(qkv, n_heads, *, tq=None, tkv=None, use_bf16_matmul=None):
    """Pallas equivalent of QKVAttentionLegacy.forward.

    qkv: [N, H*3*C, T] -> [N, H*C, T].
    use_bf16_matmul: None = auto (bf16 MXU operands only if input is bf16);
                     True = feed bf16 operands even for f32 inputs (f32 accum;
                     standard flash bf16-scores accuracy tradeoff).
    """
    bs, width, length = qkv.shape
    assert width % (3 * n_heads) == 0
    ch = width // (3 * n_heads)
    B = bs * n_heads
    T = length
    scale2 = 1.0 / math.sqrt(ch)  # (ch**-0.25 on q) * (ch**-0.25 on k), folded into q

    in_dtype = qkv.dtype
    if use_bf16_matmul is None:
        use_bf16_matmul = (in_dtype == jnp.bfloat16)
    mm_dtype = jnp.bfloat16 if use_bf16_matmul else in_dtype
    in_bytes = jnp.dtype(in_dtype).itemsize
    mm_bytes = jnp.dtype(mm_dtype).itemsize

    # ---- generation-aware sizing -------------------------------------------
    cap = _vmem_capacity_bytes()
    big_vmem = cap >= 96 * 1024 * 1024             # v5e / v6e (128 MiB VMEM)
    budget = max(int(cap * 0.75) - (8 << 20), 8 << 20)
    tq_target = 512 if big_vmem else 256
    tkv_target = 1024 if big_vmem else 512

    # ---- sequence padding (T must be a multiple of 128 unless blocks span T) -
    if T % 128 == 0 or T < 128:
        T_pad, t_actual = T, None
    else:
        T_pad, t_actual = _round_up(T, 128), T

    if T_pad % 128 == 0:
        tq = _pick_tile(T_pad, tq_target) if tq is None else tq
        tkv = _pick_tile(T_pad, tkv_target) if tkv is None else tkv
    else:                                           # tiny T (< 128): full-dim blocks
        tq = T_pad if tq is None else tq
        tkv = T_pad if tkv is None else tkv
    assert T_pad % tq == 0 and T_pad % tkv == 0
    n_q_tiles = T_pad // tq

    hb = _pick_heads_per_block(B, ch, tq, tkv, in_bytes, mm_bytes, in_bytes,
                               budget, n_q_tiles)
    footprint = _block_footprint(hb, ch, tq, tkv, in_bytes, mm_bytes, in_bytes)
    vmem_limit = int(min(max(footprint * 1.25 + (16 << 20), 32 << 20), cap * 0.85))

    # ---- select q/k/v straight out of the packed qkv (no wrapper copies) -----
    qkv_r = qkv.reshape(B, 3 * ch, T)               # contiguous reshape: free
    if t_actual is not None:
        qkv_r = jnp.pad(qkv_r, ((0, 0), (0, 0), (0, T_pad - T)))

    sublane_mult = max(8, 32 // in_bytes)           # f32: 8, bf16: 16, int8/fp8: 32
    if ch % sublane_mult == 0:
        # q/k/v are channel-blocks 0/1/2 of the packed tensor.
        q_in = k_in = v_in = qkv_r
        q_spec = pl.BlockSpec((hb, ch, tq), lambda b, qi, ki: (b, 0, qi))
        k_spec = pl.BlockSpec((hb, ch, tkv), lambda b, qi, ki: (b, 1, ki))
        v_spec = pl.BlockSpec((hb, ch, tkv), lambda b, qi, ki: (b, 2, ki))
    else:
        # TODO(synk): in-kernel channel slicing needs ch % dtype-sublane-tile == 0;
        # fall back to wrapper-side slices (one extra HBM copy) otherwise.
        q_in = qkv_r[:, :ch, :]
        k_in = qkv_r[:, ch:2 * ch, :]
        v_in = qkv_r[:, 2 * ch:, :]
        q_spec = pl.BlockSpec((hb, ch, tq), lambda b, qi, ki: (b, 0, qi))
        k_spec = pl.BlockSpec((hb, ch, tkv), lambda b, qi, ki: (b, 0, ki))
        v_spec = pl.BlockSpec((hb, ch, tkv), lambda b, qi, ki: (b, 0, ki))

    out = pl.pallas_call(
        partial(_flash_attn_kernel, scale2=scale2, mm_dtype=mm_dtype,
                kv_tile=tkv, t_actual=t_actual),
        grid=(B // hb, n_q_tiles, T_pad // tkv),
        in_specs=[q_spec, k_spec, v_spec],
        out_specs=pl.BlockSpec((hb, ch, tq), lambda b, qi, ki: (b, 0, qi)),
        out_shape=jax.ShapeDtypeStruct((B, ch, T_pad), in_dtype),
        scratch_shapes=[
            pltpu.VMEM((hb, 1, tq), jnp.float32),    # running max (lane-dense in T)
            pltpu.VMEM((hb, 1, tq), jnp.float32),    # running sum
            pltpu.VMEM((hb, ch, tq), jnp.float32),   # output accumulator [ch, tq]
            pltpu.VMEM((hb, ch, tq), mm_dtype),      # pre-scaled q (hoisted prep)
        ],
        compiler_params=pltpu.CompilerParams(
            dimension_semantics=("parallel", "parallel", "arbitrary"),
            vmem_limit_bytes=vmem_limit,
        ),
    )(q_in, k_in, v_in)

    if T_pad != T:
        out = out[:, :, :T]
    return out.reshape(bs, n_heads * ch, T)


def _reference(qkv, n_heads):
    """Plain-JAX reference mirroring the PyTorch forward exactly."""
    bs, width, length = qkv.shape
    ch = width // (3 * n_heads)
    r = qkv.reshape(bs * n_heads, 3 * ch, length)
    q, k, v = r[:, :ch], r[:, ch:2 * ch], r[:, 2 * ch:]
    scale = 1.0 / math.sqrt(math.sqrt(ch))
    w = jnp.einsum('bct,bcs->bts', q * scale, k * scale)
    w = jax.nn.softmax(w.astype(jnp.float32), axis=-1).astype(w.dtype)
    a = jnp.einsum('bts,bcs->bct', w, v)
    return a.reshape(bs, -1, length)


if __name__ == "__main__":
    # QKVAttentionLegacy has no learnable parameters; only n_heads.
    # Case 1: tiny shapes (blocks == full dims), several heads batched per step.
    n_heads, N, C, T = 4, 2, 8, 16
    qkv = jax.random.normal(jax.random.PRNGKey(0), (N, n_heads * 3 * C, T),
                            dtype=jnp.float32)
    out = jax.block_until_ready(qkv_attention_legacy(qkv, n_heads))
    ref = _reference(qkv, n_heads)
    assert out.shape == (N, n_heads * C, T)
    assert jnp.allclose(out, ref, atol=1e-4, rtol=1e-4), "mismatch vs reference (case 1)"

    # Case 2: tiled online-softmax path (multiple q and kv tiles).
    n_heads2, N2, C2, T2 = 2, 1, 8, 256
    qkv2 = jax.random.normal(jax.random.PRNGKey(1), (N2, n_heads2 * 3 * C2, T2),
                             dtype=jnp.float32)
    out2 = jax.block_until_ready(qkv_attention_legacy(qkv2, n_heads2, tq=128, tkv=128))
    ref2 = _reference(qkv2, n_heads2)
    assert out2.shape == (N2, n_heads2 * C2, T2)
    assert jnp.allclose(out2, ref2, atol=1e-4, rtol=1e-4), "mismatch vs reference (case 2)"

    # Case 3: non-multiple-of-128 sequence -> padded + in-kernel kv masking path.
    n_heads3, N3, C3, T3 = 2, 1, 8, 200
    qkv3 = jax.random.normal(jax.random.PRNGKey(2), (N3, n_heads3 * 3 * C3, T3),
                             dtype=jnp.float32)
    out3 = jax.block_until_ready(qkv_attention_legacy(qkv3, n_heads3))
    ref3 = _reference(qkv3, n_heads3)
    assert out3.shape == (N3, n_heads3 * C3, T3)
    assert jnp.allclose(out3, ref3, atol=1e-4, rtol=1e-4), "mismatch vs reference (case 3)"

    # Case 4: opt-in bf16 MXU operands for f32 inputs (loose tolerance by design).
    out4 = jax.block_until_ready(
        qkv_attention_legacy(qkv2, n_heads2, tq=128, tkv=128, use_bf16_matmul=True))
    assert jnp.allclose(out4, ref2, atol=2e-1, rtol=2e-1), "mismatch vs reference (case 4)"

    print("KERNEL_OK")
</pallas_src>

<mosaic_0001>
module attributes {stable_mosaic.version = 11 : i64} {
  func.func @_flash_attn_kernel(%arg0: i32, %arg1: i32, %arg2: i32, %arg3: memref<4x8x16xf32, #tpu.memory_space<vmem>>, %arg4: memref<4x8x16xf32, #tpu.memory_space<vmem>>, %arg5: memref<4x8x16xf32, #tpu.memory_space<vmem>>, %arg6: memref<4x8x16xf32, #tpu.memory_space<vmem>>, %arg7: memref<4x1x16xf32, #tpu.memory_space<vmem>>, %arg8: memref<4x1x16xf32, #tpu.memory_space<vmem>>, %arg9: memref<4x8x16xf32, #tpu.memory_space<vmem>>, %arg10: memref<4x8x16xf32, #tpu.memory_space<vmem>>) attributes {dimension_semantics = [#tpu.dimension_semantics<parallel>, #tpu.dimension_semantics<parallel>, #tpu.dimension_semantics<arbitrary>], iteration_bounds = array<i64: 2, 1, 1>, scalar_prefetch = 0 : i64, scratch_operands = 4 : i64, tpu.core_type = #tpu.core_type<tc>, window_params = [{transform_indices = @transform_0, window_bounds = array<i64: 4, 8, 16>}, {transform_indices = @transform_1, window_bounds = array<i64: 4, 8, 16>}, {transform_indices = @transform_2, window_bounds = array<i64: 4, 8, 16>}, {transform_indices = @transform_3, window_bounds = array<i64: 4, 8, 16>}]} {
    %c0_i32 = arith.constant 0 : i32
    %0 = arith.cmpi eq, %arg2, %c0_i32 : i32
    %1 = arith.extui %0 : i1 to i32
    %c0_i32_0 = arith.constant 0 : i32
    %2 = arith.cmpi ne, %1, %c0_i32_0 : i32
    scf.if %2 {
      %cst_32 = arith.constant 0xFF800000 : f32
      %32 = vector.broadcast %cst_32 : f32 to vector<4x1x16xf32>
      %c0_33 = arith.constant 0 : index
      %c0_34 = arith.constant 0 : index
      %c0_35 = arith.constant 0 : index
      %33 = vector.load %arg7[%c0_33, %c0_34, %c0_35] : memref<4x1x16xf32, #tpu.memory_space<vmem>>, vector<4x1x16xf32>
      tpu.vector_store %arg7[%c0_33, %c0_34, %c0_35], %32 {strides = array<i32>} : memref<4x1x16xf32, #tpu.memory_space<vmem>>, vector<4x1x16xf32>,
      %cst_36 = arith.constant 0.000000e+00 : f32
      %34 = vector.broadcast %cst_36 : f32 to vector<4x1x16xf32>
      %c0_37 = arith.constant 0 : index
      %c0_38 = arith.constant 0 : index
      %c0_39 = arith.constant 0 : index
      %35 = vector.load %arg8[%c0_37, %c0_38, %c0_39] : memref<4x1x16xf32, #tpu.memory_space<vmem>>, vector<4x1x16xf32>
      tpu.vector_store %arg8[%c0_37, %c0_38, %c0_39], %34 {strides = array<i32>} : memref<4x1x16xf32, #tpu.memory_space<vmem>>, vector<4x1x16xf32>,
      %cst_40 = arith.constant 0.000000e+00 : f32
      %36 = vector.broadcast %cst_40 : f32 to vector<4x8x16xf32>
      %c0_41 = arith.constant 0 : index
      %c0_42 = arith.constant 0 : index
      %c0_43 = arith.constant 0 : index
      %37 = vector.load %arg9[%c0_41, %c0_42, %c0_43] : memref<4x8x16xf32, #tpu.memory_space<vmem>>, vector<4x8x16xf32>
      tpu.vector_store %arg9[%c0_41, %c0_42, %c0_43], %36 {strides = array<i32>} : memref<4x8x16xf32, #tpu.memory_space<vmem>>, vector<4x8x16xf32>,
      %c0_44 = arith.constant 0 : index
      %c0_45 = arith.constant 0 : index
      %c0_46 = arith.constant 0 : index
      %38 = vector.load %arg3[%c0_44, %c0_45, %c0_46] : memref<4x8x16xf32, #tpu.memory_space<vmem>>, vector<4x8x16xf32>
      %cst_47 = arith.constant 0.353553385 : f32
      %39 = vector.broadcast %cst_47 : f32 to vector<4x8x16xf32>
      %40 = arith.mulf %38, %39 : vector<4x8x16xf32>
      %c0_48 = arith.constant 0 : index
      %c0_49 = arith.constant 0 : index
      %c0_50 = arith.constant 0 : index
      %41 = vector.load %arg10[%c0_48, %c0_49, %c0_50] : memref<4x8x16xf32, #tpu.memory_space<vmem>>, vector<4x8x16xf32>
      tpu.vector_store %arg10[%c0_48, %c0_49, %c0_50], %40 {strides = array<i32>} : memref<4x8x16xf32, #tpu.memory_space<vmem>>, vector<4x8x16xf32>,
    } else {
    }
    %c0 = arith.constant 0 : index
    %c0_1 = arith.constant 0 : index
    %c0_2 = arith.constant 0 : index
    %3 = vector.load %arg10[%c0, %c0_1, %c0_2] : memref<4x8x16xf32, #tpu.memory_space<vmem>>, vector<4x8x16xf32>
    %c0_3 = arith.constant 0 : index
    %c0_4 = arith.constant 0 : index
    %c0_5 = arith.constant 0 : index
    %4 = vector.load %arg4[%c0_3, %c0_4, %c0_5] : memref<4x8x16xf32, #tpu.memory_space<vmem>>, vector<4x8x16xf32>
    %c0_6 = arith.constant 0 : index
    %c0_7 = arith.constant 0 : index
    %c0_8 = arith.constant 0 : index
    %5 = vector.load %arg5[%c0_6, %c0_7, %c0_8] : memref<4x8x16xf32, #tpu.memory_space<vmem>>, vector<4x8x16xf32>
    "tpu.trace_start"() <{level = 10 : i32, message = "hcs,hct->hst"}> : () -> ()
    %cst = arith.constant dense<0.000000e+00> : vector<4x16x16xf32>
    %6 = tpu.matmul %4, %3, %cst {dimension_numbers = #tpu.dot_dimension_numbers<[1], [1], [2], [2], [0, 0, 0, 2, 1, 2], [0], [0]>} : vector<4x8x16xf32>, vector<4x8x16xf32>, vector<4x16x16xf32> -> vector<4x16x16xf32>
    "tpu.trace_stop"() : () -> ()
    %c0_9 = arith.constant 0 : index
    %c0_10 = arith.constant 0 : index
    %c0_11 = arith.constant 0 : index
    %7 = vector.load %arg7[%c0_9, %c0_10, %c0_11] : memref<4x1x16xf32, #tpu.memory_space<vmem>>, vector<4x1x16xf32>
    %cst_12 = arith.constant dense<0xFF800000> : vector<4x16xf32>
    %8 = vector.multi_reduction <maximumf>, %6, %cst_12 [1] : vector<4x16x16xf32> to vector<4x16xf32>
    %9 = vector.shape_cast %8 : vector<4x16xf32> to vector<4x1x16xf32>
    %10 = arith.maximumf %7, %9 : vector<4x1x16xf32>
    %11 = arith.subf %7, %10 : vector<4x1x16xf32>
    %12 = math.exp %11 : vector<4x1x16xf32>
    %13 = vector.broadcast %10 : vector<4x1x16xf32> to vector<4x16x16xf32>
    %14 = arith.subf %6, %13 : vector<4x16x16xf32>
    %15 = math.exp %14 : vector<4x16x16xf32>
    %c0_13 = arith.constant 0 : index
    %c0_14 = arith.constant 0 : index
    %c0_15 = arith.constant 0 : index
    %16 = vector.load %arg8[%c0_13, %c0_14, %c0_15] : memref<4x1x16xf32, #tpu.memory_space<vmem>>, vector<4x1x16xf32>
    %17 = arith.mulf %12, %16 : vector<4x1x16xf32>
    %cst_16 = arith.constant dense<0.000000e+00> : vector<4x16xf32>
    %18 = vector.multi_reduction <add>, %15, %cst_16 [1] : vector<4x16x16xf32> to vector<4x16xf32>
    %19 = vector.shape_cast %18 : vector<4x16xf32> to vector<4x1x16xf32>
    %20 = arith.addf %17, %19 : vector<4x1x16xf32>
    %c0_17 = arith.constant 0 : index
    %c0_18 = arith.constant 0 : index
    %c0_19 = arith.constant 0 : index
    %21 = vector.load %arg8[%c0_17, %c0_18, %c0_19] : memref<4x1x16xf32, #tpu.memory_space<vmem>>, vector<4x1x16xf32>
    tpu.vector_store %arg8[%c0_17, %c0_18, %c0_19], %20 {strides = array<i32>} : memref<4x1x16xf32, #tpu.memory_space<vmem>>, vector<4x1x16xf32>,
    %c0_20 = arith.constant 0 : index
    %c0_21 = arith.constant 0 : index
    %c0_22 = arith.constant 0 : index
    %22 = vector.load %arg9[%c0_20, %c0_21, %c0_22] : memref<4x8x16xf32, #tpu.memory_space<vmem>>, vector<4x8x16xf32>
    %23 = vector.broadcast %12 : vector<4x1x16xf32> to vector<4x8x16xf32>
    %24 = arith.mulf %23, %22 : vector<4x8x16xf32>
    "tpu.trace_start"() <{level = 10 : i32, message = "hcs,hst->hct"}> : () -> ()
    %cst_23 = arith.constant dense<0.000000e+00> : vector<4x8x16xf32>
    %25 = tpu.matmul %5, %15, %cst_23 {dimension_numbers = #tpu.dot_dimension_numbers<[2], [1], [1], [2], [0, 0, 0, 1, 1, 2], [0], [0]>} : vector<4x8x16xf32>, vector<4x16x16xf32>, vector<4x8x16xf32> -> vector<4x8x16xf32>
    "tpu.trace_stop"() : () -> ()
    %26 = arith.addf %24, %25 : vector<4x8x16xf32>
    %c0_24 = arith.constant 0 : index
    %c0_25 = arith.constant 0 : index
    %c0_26 = arith.constant 0 : index
    %27 = vector.load %arg9[%c0_24, %c0_25, %c0_26] : memref<4x8x16xf32, #tpu.memory_space<vmem>>, vector<4x8x16xf32>
    tpu.vector_store %arg9[%c0_24, %c0_25, %c0_26], %26 {strides = array<i32>} : memref<4x8x16xf32, #tpu.memory_space<vmem>>, vector<4x8x16xf32>,
    %c0_27 = arith.constant 0 : index
    %c0_28 = arith.constant 0 : index
    %c0_29 = arith.constant 0 : index
    %28 = vector.load %arg7[%c0_27, %c0_28, %c0_29] : memref<4x1x16xf32, #tpu.memory_space<vmem>>, vector<4x1x16xf32>
    tpu.vector_store %arg7[%c0_27, %c0_28, %c0_29], %10 {strides = array<i32>} : memref<4x1x16xf32, #tpu.memory_space<vmem>>, vector<4x1x16xf32>,
    %c0_i32_30 = arith.constant 0 : i32
    %29 = arith.cmpi eq, %arg2, %c0_i32_30 : i32
    %30 = arith.extui %29 : i1 to i32
    %c0_i32_31 = arith.constant 0 : i32
    %31 = arith.cmpi ne, %30, %c0_i32_31 : i32
    scf.if %31 {
      %c0_32 = arith.constant 0 : index
      %c0_33 = arith.constant 0 : index
      %c0_34 = arith.constant 0 : index
      %32 = vector.load %arg8[%c0_32, %c0_33, %c0_34] : memref<4x1x16xf32, #tpu.memory_space<vmem>>, vector<4x1x16xf32>
      %33 = tpu.reciprocal %32 {approx = true} : vector<4x1x16xf32> -> vector<4x1x16xf32>
      %34 = arith.mulf %32, %33 : vector<4x1x16xf32>
      %cst_35 = arith.constant 2.000000e+00 : f32
      %35 = vector.broadcast %cst_35 : f32 to vector<4x1x16xf32>
      %36 = arith.subf %35, %34 : vector<4x1x16xf32>
      %37 = arith.mulf %33, %36 : vector<4x1x16xf32>
      %38 = arith.mulf %32, %37 : vector<4x1x16xf32>
      %cst_36 = arith.constant 2.000000e+00 : f32
      %39 = vector.broadcast %cst_36 : f32 to vector<4x1x16xf32>
      %40 = arith.subf %39, %38 : vector<4x1x16xf32>
      %41 = arith.mulf %37, %40 : vector<4x1x16xf32>
      %c0_37 = arith.constant 0 : index
      %c0_38 = arith.constant 0 : index
      %c0_39 = arith.constant 0 : index
      %42 = vector.load %arg9[%c0_37, %c0_38, %c0_39] : memref<4x8x16xf32, #tpu.memory_space<vmem>>, vector<4x8x16xf32>
      %43 = vector.broadcast %41 : vector<4x1x16xf32> to vector<4x8x16xf32>
      %44 = arith.mulf %42, %43 : vector<4x8x16xf32>
      %c0_40 = arith.constant 0 : index
      %c0_41 = arith.constant 0 : index
      %c0_42 = arith.constant 0 : index
      %45 = vector.load %arg6[%c0_40, %c0_41, %c0_42] : memref<4x8x16xf32, #tpu.memory_space<vmem>>, vector<4x8x16xf32>
      tpu.vector_store %arg6[%c0_40, %c0_41, %c0_42], %44 {strides = array<i32>} : memref<4x8x16xf32, #tpu.memory_space<vmem>>, vector<4x8x16xf32>,
    } else {
    }
    return
  }
  func.func @transform_0(%arg0: i32, %arg1: i32, %arg2: i32) -> (i32, i32, i32) {
    %c0_i32 = arith.constant 0 : i32
    %c0_i32_0 = arith.constant 0 : i32
    return %arg0, %c0_i32, %arg1 : i32, i32, i32
  }
  func.func @transform_1(%arg0: i32, %arg1: i32, %arg2: i32) -> (i32, i32, i32) {
    %c1_i32 = arith.constant 1 : i32
    %c0_i32 = arith.constant 0 : i32
    return %arg0, %c1_i32, %arg2 : i32, i32, i32
  }
  func.func @transform_2(%arg0: i32, %arg1: i32, %arg2: i32) -> (i32, i32, i32) {
    %c2_i32 = arith.constant 2 : i32
    %c0_i32 = arith.constant 0 : i32
    return %arg0, %c2_i32, %arg2 : i32, i32, i32
  }
  func.func @transform_3(%arg0: i32, %arg1: i32, %arg2: i32) -> (i32, i32, i32) {
    %c0_i32 = arith.constant 0 : i32
    %c0_i32_0 = arith.constant 0 : i32
    return %arg0, %c0_i32, %arg1 : i32, i32, i32
  }
}

</mosaic_0001>

<llo_original>
// kernel: tpu_custom_call.1
$region0: #{tpu_custom_call.1}
  #allocation0 [shape = 'u32[]', space=smem, size = 0x4, offset = 0x4, fixed_abs, tag = 'smem constant byte address 0x4 - core index']
  #allocation1 [shape = 'u32[144,128]{1,0:T(1,128)}', space=vmem, size = 0x12000, scoped, tag = 'internal scratch']
  #allocation2 [shape = 'f32[4,1,16]{2,1,0:T(1,128)}', space=vmem, size = 0x800, scoped, tag = 'scratch operand']
  #allocation3 [shape = 'f32[4,1,16]{2,1,0:T(1,128)}', space=vmem, size = 0x800, scoped, tag = 'scratch operand']
  #allocation4 [shape = 'f32[4,8,16]{2,1,0:T(8,128)}', space=vmem, size = 0x4000, scoped, tag = 'scratch operand']
  #allocation5 [shape = 'f32[4,8,16]{2,1,0:T(8,128)}', space=vmem, size = 0x4000, scoped, tag = 'scratch operand']
  %s0 = inlined_call_operand.vmem [shape: f32[8,24,16], index: 0, kind: input, shape index: {}]
  %s1 = inlined_call_operand.vmem [shape: f32[8,24,16], index: 1, kind: input, shape index: {}]
  %s2 = inlined_call_operand.vmem [shape: f32[8,24,16], index: 2, kind: input, shape index: {}]
  %s3 = inlined_call_operand.hbm [shape: f32[8,8,16], index: 3, kind: output, shape index: {}]
  %s4 = sld [smem:[#allocation0]]
  $region167: #{tpu_custom_call.1} parent=0
    _
  %s6 = ssub.s32 1, %s4
  %s7 = scalar_select 0, %s6, %s4
  $region1: #{tpu_custom_call.1} parent=0
    #allocation6 [shape = 'u8[32768]{0}', space=vmem, size = 0x8000, scoped, tag = 'input window, operand 0']
    #allocation7 [shape = 'u8[32768]{0}', space=vmem, size = 0x8000, scoped, tag = 'input window, operand 1']
    #allocation8 [shape = 'u8[32768]{0}', space=vmem, size = 0x8000, scoped, tag = 'input window, operand 2']
    #allocation9 [shape = 'u8[32768]{0}', space=vmem, size = 0x8000, scoped, tag = 'output window, operand 0']
    #allocation10 [shape = 's32[2]{0}', space=sflag, size = 0x8, scoped, tag = 'scoped memory for tpu_custom_call.1']
    %8 = vsyncpa [#allocation10], 0
    %s9 = scalar_lea.sflag [#allocation10], 1
    %10 = vsyncpa %s9, 0
    loop: start=0, step=1, limit=4
    $region2: #{tpu_custom_call.1} parent=1 // loop_pre_header
      _
    $region3: #{tpu_custom_call.1} parent=1 // loop_header
      %s12 = sphi 0, %s16
      %p13 = scmp.ge.s32.totalorder %s12, 4
      %s19 = sphi 0, %s38
      %s20 = sphi 0, %s34
      %s21 = sphi 0, %s30
      %s22 = sphi 0, %s19
      %s23 = sphi 0, %s20
      %s24 = sphi 0, %s21
      %s25 = sphi 0, %s22
      %s26 = sphi 0, %s23
      %s27 = sphi 0, %s24
      %s43 = sphi 0, %s45
      %s46 = sphi 0, %s43
      %s47 = sphi 0, %s46
      %s63 = sphi 0, %s47
      %s71 = sphi 0, %s73
      %s74 = sphi 0, %s71
      %s75 = sphi 0, %s74
      %s91 = sphi 0, %s75
      %s99 = sphi 0, %s101
      %s102 = sphi 0, %s99
      %s103 = sphi 0, %s102
      %s119 = sphi 0, %s103
      %s127 = sphi 0, %s129
      %s130 = sphi 0, %s127
      %s131 = sphi 0, %s130
      %s147 = sphi 0, %s131
    $region4: #{tpu_custom_call.1} parent=1 // loop_header_branch
      %15 = sbr.rel (%p13) target = $region8
    $region5: #{tpu_custom_call.1} parent=1 // loop_body
      %s17 = ssub.s32 %s12, 1
      %s18 = ssub.s32 %s12, 2
      %s28 = sadd.s32 1, %s21
      %p29 = scmp.ge.s32.totalorder %s28, 1
      %s30 = scalar_select %p29, 0, %s28
      %s31 = sadd.s32 1, %s20
      %s32 = scalar_select %p29, %s31, %s20
      %p33 = scmp.ge.s32.totalorder %s32, 1
      %s34 = scalar_select %p33, 0, %s32
      %s35 = sadd.s32 1, %s19
      %s36 = scalar_select %p33, %s35, %s19
      %p37 = scmp.ge.s32.totalorder %s36, 2
      %s38 = scalar_select %p37, 0, %s36
      %s39 = ssub.s32 %s19, %s38
      %s40 = ssub.s32 %s20, %s34
      %s41 = sor.u32 %s39, %s40
      %p42 = scmp.eq.s32.totalorder %s41, 0
      %s44 = sadd.s32 %s43, 1
      %s45 = scalar_select %p42, %s43, %s44
      %p48 = pneg %p42
      %p49 = scmp.eq.s32.totalorder %s12, 1
      %p50 = por %p48, %p49
      %p51 = scmp.ne.s32.totalorder %s43, %s46
      %p52 = scmp.eq.s32.totalorder %s12, 0
      %p53 = por %p51, %p52
      %p54 = scmp.ne.s32.totalorder %s43, %s46
      %p55 = scmp.eq.s32.totalorder %s17, 1
      %p56 = por %p54, %p55
      %p57 = scmp.ne.s32.totalorder %s46, %s47
      %p58 = scmp.eq.s32.totalorder %s17, 0
      %p59 = por %p57, %p58
      %p60 = scmp.ne.s32.totalorder %s46, %s47
      %p61 = scmp.eq.s32.totalorder %s18, 1
      %p62 = por %p60, %p61
      %p64 = scmp.ne.s32.totalorder %s47, %s63
      %p65 = scmp.eq.s32.totalorder %s18, 0
      %p66 = por %p64, %p65
      %s67 = ssub.s32 %s19, %s38
      %s68 = ssub.s32 %s21, %s30
      %s69 = sor.u32 %s67, %s68
      %p70 = scmp.eq.s32.totalorder %s69, 0
      %s72 = sadd.s32 %s71, 1
      %s73 = scalar_select %p70, %s71, %s72
      %p76 = pneg %p70
      %p77 = scmp.eq.s32.totalorder %s12, 1
      %p78 = por %p76, %p77
      %p79 = scmp.ne.s32.totalorder %s71, %s74
      %p80 = scmp.eq.s32.totalorder %s12, 0
      %p81 = por %p79, %p80
      %p82 = scmp.ne.s32.totalorder %s71, %s74
      %p83 = scmp.eq.s32.totalorder %s17, 1
      %p84 = por %p82, %p83
      %p85 = scmp.ne.s32.totalorder %s74, %s75
      %p86 = scmp.eq.s32.totalorder %s17, 0
      %p87 = por %p85, %p86
      %p88 = scmp.ne.s32.totalorder %s74, %s75
      %p89 = scmp.eq.s32.totalorder %s18, 1
      %p90 = por %p88, %p89
      %p92 = scmp.ne.s32.totalorder %s75, %s91
      %p93 = scmp.eq.s32.totalorder %s18, 0
      %p94 = por %p92, %p93
      %s95 = ssub.s32 %s19, %s38
      %s96 = ssub.s32 %s21, %s30
      %s97 = sor.u32 %s95, %s96
      %p98 = scmp.eq.s32.totalorder %s97, 0
      %s100 = sadd.s32 %s99, 1
      %s101 = scalar_select %p98, %s99, %s100
      %p104 = pneg %p98
      %p105 = scmp.eq.s32.totalorder %s12, 1
      %p106 = por %p104, %p105
      %p107 = scmp.ne.s32.totalorder %s99, %s102
      %p108 = scmp.eq.s32.totalorder %s12, 0
      %p109 = por %p107, %p108
      %p110 = scmp.ne.s32.totalorder %s99, %s102
      %p111 = scmp.eq.s32.totalorder %s17, 1
      %p112 = por %p110, %p111
      %p113 = scmp.ne.s32.totalorder %s102, %s103
      %p114 = scmp.eq.s32.totalorder %s17, 0
      %p115 = por %p113, %p114
      %p116 = scmp.ne.s32.totalorder %s102, %s103
      %p117 = scmp.eq.s32.totalorder %s18, 1
      %p118 = por %p116, %p117
      %p120 = scmp.ne.s32.totalorder %s103, %s119
      %p121 = scmp.eq.s32.totalorder %s18, 0
      %p122 = por %p120, %p121
      %s123 = ssub.s32 %s19, %s38
      %s124 = ssub.s32 %s20, %s34
      %s125 = sor.u32 %s123, %s124
      %p126 = scmp.eq.s32.totalorder %s125, 0
      %s128 = sadd.s32 %s127, 1
      %s129 = scalar_select %p126, %s127, %s128
      %p132 = pneg %p126
      %p133 = scmp.eq.s32.totalorder %s12, 1
      %p134 = por %p132, %p133
      %p135 = scmp.ne.s32.totalorder %s127, %s130
      %p136 = scmp.eq.s32.totalorder %s12, 0
      %p137 = por %p135, %p136
      %p138 = scmp.ne.s32.totalorder %s127, %s130
      %p139 = scmp.eq.s32.totalorder %s17, 1
      %p140 = por %p138, %p139
      %p141 = scmp.ne.s32.totalorder %s130, %s131
      %p142 = scmp.eq.s32.totalorder %s17, 0
      %p143 = por %p141, %p142
      %p144 = scmp.ne.s32.totalorder %s130, %s131
      %p145 = scmp.eq.s32.totalorder %s18, 1
      %p146 = por %p144, %p145
      %p148 = scmp.ne.s32.totalorder %s131, %s147
      %p149 = scmp.eq.s32.totalorder %s18, 0
      %p150 = por %p148, %p149
      %p151 = scmp.le.s32.totalorder 1, %s12
      %p152 = scmp.lt.s32.totalorder %s12, 3
      %p153 = pnand %p151, %p152
      %p154 = pneg %p153
      // Predicated region
      $region9: #{tpu_custom_call.1} parent=5 // pred_check
        _
      $region10: #{tpu_custom_call.1} parent=5 // pred_check_branch
        %156 = sbr.rel (%p153) target = $region12
      $region11: #{tpu_custom_call.1} parent=5 // pred_region
        %s157 = ssub.s32 %s12, 1
      $region12: #{tpu_custom_call.1} parent=5 // pred_fallthru
        _
      %p158 = scmp.lt.s32.totalorder %s12, 2
      // Predicated region
      $region13: #{tpu_custom_call.1} parent=5 // pred_check
        %p159 = pneg %p158
      $region14: #{tpu_custom_call.1} parent=5 // pred_check_branch
        %161 = sbr.rel (%p159) target = $region16
      $region15: #{tpu_custom_call.1} parent=5 // pred_region
        // Predicated region
        $region17: #{tpu_custom_call.1} parent=15 // pred_check
          %p162 = pneg %p53
        $region18: #{tpu_custom_call.1} parent=15 // pred_check_branch
          %164 = sbr.rel (%p162) target = $region20
        $region19: #{tpu_custom_call.1} parent=15 // pred_region
          %s165 = sand.u32 %s43, 1
          %s166 = sand.u32 %s43, 1
          %s167 = smul.addr %s166, 32
          %s168 = scalar_lea.vmem [#allocation6], %s167
          %s169 = smul.u32 4, %s19
          %s170 = smul.addr %s169, 3
          %s171 = sadd.s32 %s20, %s170
          %s172 = smul.addr %s171, 8
          %s173 = scalar_lea.vmem %s0, %s172
          // Predicated region
          $region21: #{tpu_custom_call.1} parent=19 // pred_check
            _
          $region22: #{tpu_custom_call.1} parent=19 // pred_check_branch
            %175 = sbr.rel (0) target = $region24
          $region23: #{tpu_custom_call.1} parent=19 // pred_region
            // Predicated region
            $region25: #{tpu_custom_call.1} parent=23 // pred_check
              _
            $region26: #{tpu_custom_call.1} parent=23 // pred_check_branch
              %177 = sbr.rel (0) target = $region28
            $region27: #{tpu_custom_call.1} parent=23 // pred_region
              // Predicated region
              $region40: #{tpu_custom_call.1} parent=27 // pred_check
                _
              $region41: #{tpu_custom_call.1} parent=27 // pred_check_branch
                %199 = sbr.rel (0) target = $region43
              $region42: #{tpu_custom_call.1} parent=27 // pred_region
                loop: start=0, step=1, limit=1
                $region44: #{tpu_custom_call.1} parent=42 // loop_pre_header
                  _
                $region45: #{tpu_custom_call.1} parent=42 // loop_header
                  %s201 = sphi 0, %s205
                  %p202 = scmp.ge.s32.totalorder %s201, 1
                  %s206 = sphi %s173, %s173
                  %s207 = sphi %s168, %s168
                $region46: #{tpu_custom_call.1} parent=42 // loop_header_branch
                  %204 = sbr.rel (%p202) target = $region50
                $region47: #{tpu_custom_call.1} parent=42 // loop_body
                  %v208 = vld [vmem:[%s206] sm:$0xff]
                  %209 = vst [vmem:[%s207] sm:$0xff] %v208
                  %v210 = vld [vmem:[%s206 + $0x18] sm:$0xff]
                  %211 = vst [vmem:[%s207 + $0x8] sm:$0xff] %v210
                  %v212 = vld [vmem:[%s206 + $0x30] sm:$0xff]
                  %213 = vst [vmem:[%s207 + $0x10] sm:$0xff] %v212
                  %v214 = vld [vmem:[%s206 + $0x48] sm:$0xff]
                  %215 = vst [vmem:[%s207 + $0x18] sm:$0xff] %v214
                $region48: #{tpu_custom_call.1} parent=42 // loop_footer
                  %s205 = sadd.s32 1, %s201
                $region49: #{tpu_custom_call.1} parent=42 // loop_footer_branch
                  %200 = sbr.rel target = $region45
                $region50: #{tpu_custom_call.1} parent=42 // loop_exit
                  _
              $region43: #{tpu_custom_call.1} parent=27 // pred_fallthru
                _
              // Predicated region
              $region51: #{tpu_custom_call.1} parent=27 // pred_check
                _
              $region52: #{tpu_custom_call.1} parent=27 // pred_check_branch
                %217 = sbr.rel target = $region54
              $region53: #{tpu_custom_call.1} parent=27 // pred_region
                _
              $region54: #{tpu_custom_call.1} parent=27 // pred_fallthru
                _
            $region28: #{tpu_custom_call.1} parent=23 // pred_fallthru
              _
            // Predicated region
            $region29: #{tpu_custom_call.1} parent=23 // pred_check
              _
            $region30: #{tpu_custom_call.1} parent=23 // pred_check_branch
              %179 = sbr.rel target = $region32
            $region31: #{tpu_custom_call.1} parent=23 // pred_region
              %s181 = ssub.s32 256, 1
              loop: start=0, step=1, limit=1
              $region33: #{tpu_custom_call.1} parent=31 // loop_pre_header
                _
              $region34: #{tpu_custom_call.1} parent=31 // loop_header
                %s183 = sphi 0, %s187
                %p184 = scmp.ge.s32.totalorder %s183, 1
                %s188 = sphi %s173, %s173
                %s189 = sphi %s168, %s168
              $region35: #{tpu_custom_call.1} parent=31 // loop_header_branch
                %186 = sbr.rel (%p184) target = $region39
              $region36: #{tpu_custom_call.1} parent=31 // loop_body
                %v190 = vld [vmem:[%s188] sm:%s181]
                %191 = vst [vmem:[%s189] sm:%s181] %v190
                %v192 = vld [vmem:[%s188 + $0x18] sm:%s181]
                %193 = vst [vmem:[%s189 + $0x8] sm:%s181] %v192
                %v194 = vld [vmem:[%s188 + $0x30] sm:%s181]
                %195 = vst [vmem:[%s189 + $0x10] sm:%s181] %v194
                %v196 = vld [vmem:[%s188 + $0x48] sm:%s181]
                %197 = vst [vmem:[%s189 + $0x18] sm:%s181] %v196
              $region37: #{tpu_custom_call.1} parent=31 // loop_footer
                %s187 = sadd.s32 1, %s183
              $region38: #{tpu_custom_call.1} parent=31 // loop_footer_branch
                %182 = sbr.rel target = $region34
              $region39: #{tpu_custom_call.1} parent=31 // loop_exit
                _
            $region32: #{tpu_custom_call.1} parent=23 // pred_fallthru
              _
          $region24: #{tpu_custom_call.1} parent=19 // pred_fallthru
            _
          %218 = vnop
        $region20: #{tpu_custom_call.1} parent=15 // pred_fallthru
          _
        // Predicated region
        $region55: #{tpu_custom_call.1} parent=15 // pred_check
          %p219 = pneg %p81
        $region56: #{tpu_custom_call.1} parent=15 // pred_check_branch
          %221 = sbr.rel (%p219) target = $region58
        $region57: #{tpu_custom_call.1} parent=15 // pred_region
          %s222 = sand.u32 %s71, 1
          %s223 = sand.u32 %s71, 1
          %s224 = smul.addr %s223, 32
          %s225 = scalar_lea.vmem [#allocation7], %s224
          %s226 = smul.u32 4, %s19
          %s227 = sadd.s32 %s21, 1
          %s228 = smul.addr %s226, 3
          %s229 = sadd.s32 %s227, %s228
          %s230 = smul.addr %s229, 8
          %s231 = scalar_lea.vmem %s1, %s230
          // Predicated region
          $region59: #{tpu_custom_call.1} parent=57 // pred_check
            _
          $region60: #{tpu_custom_call.1} parent=57 // pred_check_branch
            %233 = sbr.rel (0) target = $region62
          $region61: #{tpu_custom_call.1} parent=57 // pred_region
            // Predicated region
            $region63: #{tpu_custom_call.1} parent=61 // pred_check
              _
            $region64: #{tpu_custom_call.1} parent=61 // pred_check_branch
              %235 = sbr.rel (0) target = $region66
            $region65: #{tpu_custom_call.1} parent=61 // pred_region
              // Predicated region
              $region78: #{tpu_custom_call.1} parent=65 // pred_check
                _
              $region79: #{tpu_custom_call.1} parent=65 // pred_check_branch
                %257 = sbr.rel (0) target = $region81
              $region80: #{tpu_custom_call.1} parent=65 // pred_region
                loop: start=0, step=1, limit=1
                $region82: #{tpu_custom_call.1} parent=80 // loop_pre_header
                  _
                $region83: #{tpu_custom_call.1} parent=80 // loop_header
                  %s259 = sphi 0, %s263
                  %p260 = scmp.ge.s32.totalorder %s259, 1
                  %s264 = sphi %s231, %s231
                  %s265 = sphi %s225, %s225
                $region84: #{tpu_custom_call.1} parent=80 // loop_header_branch
                  %262 = sbr.rel (%p260) target = $region88
                $region85: #{tpu_custom_call.1} parent=80 // loop_body
                  %v266 = vld [vmem:[%s264] sm:$0xff]
                  %267 = vst [vmem:[%s265] sm:$0xff] %v266
                  %v268 = vld [vmem:[%s264 + $0x18] sm:$0xff]
                  %269 = vst [vmem:[%s265 + $0x8] sm:$0xff] %v268
                  %v270 = vld [vmem:[%s264 + $0x30] sm:$0xff]
                  %271 = vst [vmem:[%s265 + $0x10] sm:$0xff] %v270
                  %v272 = vld [vmem:[%s264 + $0x48] sm:$0xff]
                  %273 = vst [vmem:[%s265 + $0x18] sm:$0xff] %v272
                $region86: #{tpu_custom_call.1} parent=80 // loop_footer
                  %s263 = sadd.s32 1, %s259
                $region87: #{tpu_custom_call.1} parent=80 // loop_footer_branch
                  %258 = sbr.rel target = $region83
                $region88: #{tpu_custom_call.1} parent=80 // loop_exit
                  _
              $region81: #{tpu_custom_call.1} parent=65 // pred_fallthru
                _
              // Predicated region
              $region89: #{tpu_custom_call.1} parent=65 // pred_check
                _
              $region90: #{tpu_custom_call.1} parent=65 // pred_check_branch
                %275 = sbr.rel target = $region92
              $region91: #{tpu_custom_call.1} parent=65 // pred_region
                _
              $region92: #{tpu_custom_call.1} parent=65 // pred_fallthru
                _
            $region66: #{tpu_custom_call.1} parent=61 // pred_fallthru
              _
            // Predicated region
            $region67: #{tpu_custom_call.1} parent=61 // pred_check
              _
            $region68: #{tpu_custom_call.1} parent=61 // pred_check_branch
              %237 = sbr.rel target = $region70
            $region69: #{tpu_custom_call.1} parent=61 // pred_region
              %s239 = ssub.s32 256, 1
              loop: start=0, step=1, limit=1
              $region71: #{tpu_custom_call.1} parent=69 // loop_pre_header
                _
              $region72: #{tpu_custom_call.1} parent=69 // loop_header
                %s241 = sphi 0, %s245
                %p242 = scmp.ge.s32.totalorder %s241, 1
                %s246 = sphi %s231, %s231
                %s247 = sphi %s225, %s225
              $region73: #{tpu_custom_call.1} parent=69 // loop_header_branch
                %244 = sbr.rel (%p242) target = $region77
              $region74: #{tpu_custom_call.1} parent=69 // loop_body
                %v248 = vld [vmem:[%s246] sm:%s239]
                %249 = vst [vmem:[%s247] sm:%s239] %v248
                %v250 = vld [vmem:[%s246 + $0x18] sm:%s239]
                %251 = vst [vmem:[%s247 + $0x8] sm:%s239] %v250
                %v252 = vld [vmem:[%s246 + $0x30] sm:%s239]
                %253 = vst [vmem:[%s247 + $0x10] sm:%s239] %v252
                %v254 = vld [vmem:[%s246 + $0x48] sm:%s239]
                %255 = vst [vmem:[%s247 + $0x18] sm:%s239] %v254
              $region75: #{tpu_custom_call.1} parent=69 // loop_footer
                %s245 = sadd.s32 1, %s241
              $region76: #{tpu_custom_call.1} parent=69 // loop_footer_branch
                %240 = sbr.rel target = $region72
              $region77: #{tpu_custom_call.1} parent=69 // loop_exit
                _
            $region70: #{tpu_custom_call.1} parent=61 // pred_fallthru
              _
          $region62: #{tpu_custom_call.1} parent=57 // pred_fallthru
            _
          %276 = vnop
        $region58: #{tpu_custom_call.1} parent=15 // pred_fallthru
          _
        // Predicated region
        $region93: #{tpu_custom_call.1} parent=15 // pred_check
          %p277 = pneg %p109
        $region94: #{tpu_custom_call.1} parent=15 // pred_check_branch
          %279 = sbr.rel (%p277) target = $region96
        $region95: #{tpu_custom_call.1} parent=15 // pred_region
          %s280 = sand.u32 %s99, 1
          %s281 = sand.u32 %s99, 1
          %s282 = smul.addr %s281, 32
          %s283 = scalar_lea.vmem [#allocation8], %s282
          %s284 = smul.u32 4, %s19
          %s285 = sadd.s32 %s21, 2
          %s286 = smul.addr %s284, 3
          %s287 = sadd.s32 %s285, %s286
          %s288 = smul.addr %s287, 8
          %s289 = scalar_lea.vmem %s2, %s288
          // Predicated region
          $region97: #{tpu_custom_call.1} parent=95 // pred_check
            _
          $region98: #{tpu_custom_call.1} parent=95 // pred_check_branch
            %291 = sbr.rel (0) target = $region100
          $region99: #{tpu_custom_call.1} parent=95 // pred_region
            // Predicated region
            $region101: #{tpu_custom_call.1} parent=99 // pred_check
              _
            $region102: #{tpu_custom_call.1} parent=99 // pred_check_branch
              %293 = sbr.rel (0) target = $region104
            $region103: #{tpu_custom_call.1} parent=99 // pred_region
              // Predicated region
              $region116: #{tpu_custom_call.1} parent=103 // pred_check
                _
              $region117: #{tpu_custom_call.1} parent=103 // pred_check_branch
                %315 = sbr.rel (0) target = $region119
              $region118: #{tpu_custom_call.1} parent=103 // pred_region
                loop: start=0, step=1, limit=1
                $region120: #{tpu_custom_call.1} parent=118 // loop_pre_header
                  _
                $region121: #{tpu_custom_call.1} parent=118 // loop_header
                  %s317 = sphi 0, %s321
                  %p318 = scmp.ge.s32.totalorder %s317, 1
                  %s322 = sphi %s289, %s289
                  %s323 = sphi %s283, %s283
                $region122: #{tpu_custom_call.1} parent=118 // loop_header_branch
                  %320 = sbr.rel (%p318) target = $region126
                $region123: #{tpu_custom_call.1} parent=118 // loop_body
                  %v324 = vld [vmem:[%s322] sm:$0xff]
                  %325 = vst [vmem:[%s323] sm:$0xff] %v324
                  %v326 = vld [vmem:[%s322 + $0x18] sm:$0xff]
                  %327 = vst [vmem:[%s323 + $0x8] sm:$0xff] %v326
                  %v328 = vld [vmem:[%s322 + $0x30] sm:$0xff]
                  %329 = vst [vmem:[%s323 + $0x10] sm:$0xff] %v328
                  %v330 = vld [vmem:[%s322 + $0x48] sm:$0xff]
                  %331 = vst [vmem:[%s323 + $0x18] sm:$0xff] %v330
                $region124: #{tpu_custom_call.1} parent=118 // loop_footer
                  %s321 = sadd.s32 1, %s317
                $region125: #{tpu_custom_call.1} parent=118 // loop_footer_branch
                  %316 = sbr.rel target = $region121
                $region126: #{tpu_custom_call.1} parent=118 // loop_exit
                  _
              $region119: #{tpu_custom_call.1} parent=103 // pred_fallthru
                _
              // Predicated region
              $region127: #{tpu_custom_call.1} parent=103 // pred_check
                _
              $region128: #{tpu_custom_call.1} parent=103 // pred_check_branch
                %333 = sbr.rel target = $region130
              $region129: #{tpu_custom_call.1} parent=103 // pred_region
                _
              $region130: #{tpu_custom_call.1} parent=103 // pred_fallthru
                _
            $region104: #{tpu_custom_call.1} parent=99 // pred_fallthru
              _
            // Predicated region
            $region105: #{tpu_custom_call.1} parent=99 // pred_check
              _
            $region106: #{tpu_custom_call.1} parent=99 // pred_check_branch
              %295 = sbr.rel target = $region108
            $region107: #{tpu_custom_call.1} parent=99 // pred_region
              %s297 = ssub.s32 256, 1
              loop: start=0, step=1, limit=1
              $region109: #{tpu_custom_call.1} parent=107 // loop_pre_header
                _
              $region110: #{tpu_custom_call.1} parent=107 // loop_header
                %s299 = sphi 0, %s303
                %p300 = scmp.ge.s32.totalorder %s299, 1
                %s304 = sphi %s289, %s289
                %s305 = sphi %s283, %s283
              $region111: #{tpu_custom_call.1} parent=107 // loop_header_branch
                %302 = sbr.rel (%p300) target = $region115
              $region112: #{tpu_custom_call.1} parent=107 // loop_body
                %v306 = vld [vmem:[%s304] sm:%s297]
                %307 = vst [vmem:[%s305] sm:%s297] %v306
                %v308 = vld [vmem:[%s304 + $0x18] sm:%s297]
                %309 = vst [vmem:[%s305 + $0x8] sm:%s297] %v308
                %v310 = vld [vmem:[%s304 + $0x30] sm:%s297]
                %311 = vst [vmem:[%s305 + $0x10] sm:%s297] %v310
                %v312 = vld [vmem:[%s304 + $0x48] sm:%s297]
                %313 = vst [vmem:[%s305 + $0x18] sm:%s297] %v312
              $region113: #{tpu_custom_call.1} parent=107 // loop_footer
                %s303 = sadd.s32 1, %s299
              $region114: #{tpu_custom_call.1} parent=107 // loop_footer_branch
                %298 = sbr.rel target = $region110
              $region115: #{tpu_custom_call.1} parent=107 // loop_exit
                _
            $region108: #{tpu_custom_call.1} parent=99 // pred_fallthru
              _
          $region100: #{tpu_custom_call.1} parent=95 // pred_fallthru
            _
          %334 = vnop
        $region96: #{tpu_custom_call.1} parent=15 // pred_fallthru
          _
      $region16: #{tpu_custom_call.1} parent=5 // pred_fallthru
        _
      %p335 = scmp.le.s32.totalorder 1, %s12
      %p336 = scmp.lt.s32.totalorder %s12, 3
      %p337 = pnand %p335, %p336
      %p338 = pneg %p337
      // Predicated region
      $region131: #{tpu_custom_call.1} parent=5 // pred_check
        _
      $region132: #{tpu_custom_call.1} parent=5 // pred_check_branch
        %340 = sbr.rel (%p337) target = $region134
      $region133: #{tpu_custom_call.1} parent=5 // pred_region
        %s341 = ssub.s32 %s12, 1
        %s342 = sand.u32 %s46, 1
        %s343 = sand.u32 %s46, 1
        %s344 = smul.addr %s343, 32
        %s345 = scalar_lea.vmem [#allocation6], %s344
        // Predicated region
        $region135: #{tpu_custom_call.1} parent=133 // pred_check
          %p346 = pneg %p59
        $region136: #{tpu_custom_call.1} parent=133 // pred_check_branch
          %348 = sbr.rel (%p346) target = $region138
        $region137: #{tpu_custom_call.1} parent=133 // pred_region
          _
        $region138: #{tpu_custom_call.1} parent=133 // pred_fallthru
          _
        %s349 = sand.u32 %s74, 1
        %s350 = sand.u32 %s74, 1
        %s351 = smul.addr %s350, 32
        %s352 = scalar_lea.vmem [#allocation7], %s351
        // Predicated region
        $region139: #{tpu_custom_call.1} parent=133 // pred_check
          %p353 = pneg %p87
        $region140: #{tpu_custom_call.1} parent=133 // pred_check_branch
          %355 = sbr.rel (%p353) target = $region142
        $region141: #{tpu_custom_call.1} parent=133 // pred_region
          _
        $region142: #{tpu_custom_call.1} parent=133 // pred_fallthru
          _
        %s356 = sand.u32 %s102, 1
        %s357 = sand.u32 %s102, 1
        %s358 = smul.addr %s357, 32
        %s359 = scalar_lea.vmem [#allocation8], %s358
        // Predicated region
        $region143: #{tpu_custom_call.1} parent=133 // pred_check
          %p360 = pneg %p115
        $region144: #{tpu_custom_call.1} parent=133 // pred_check_branch
          %362 = sbr.rel (%p360) target = $region146
        $region145: #{tpu_custom_call.1} parent=133 // pred_region
          _
        $region146: #{tpu_custom_call.1} parent=133 // pred_fallthru
          _
        %s363 = sand.u32 %s46, 1
        %s364 = sand.u32 %s46, 1
        %s365 = smul.addr %s364, 32
        %s366 = scalar_lea.vmem [#allocation6], %s365
        %p367 = pneg %p59
        %p368 = pneg %p56
        %s369 = sand.u32 %s74, 1
        %s370 = sand.u32 %s74, 1
        %s371 = smul.addr %s370, 32
        %s372 = scalar_lea.vmem [#allocation7], %s371
        %p373 = pneg %p87
        %p374 = pneg %p84
        %s375 = sand.u32 %s102, 1
        %s376 = sand.u32 %s102, 1
        %s377 = smul.addr %s376, 32
        %s378 = scalar_lea.vmem [#allocation8], %s377
        %p379 = pneg %p115
        %p380 = pneg %p112
        %p381 = pneg %p143
        %p382 = pneg %p140
        %s383 = sand.u32 %s130, 1
        %s384 = scalar_lea.sflag [#allocation10], %s383
        %s385 = sand.u32 %s130, 1
        %s386 = smul.addr %s385, 32
        %s387 = scalar_lea.vmem [#allocation9], %s386
        %s388 = smul.u32 4, %s22
        %s389 = smul.u32 4, %s22
        %s390 = smul.u32 4, %s22
        %s391 = smul.u32 4, %s22
        %p392 = scmp.eq.s32.totalorder %s24, 0
        // Predicated region
        $region147: #{tpu_custom_call.1} parent=133 // pred_check
          %p393 = pneg %p392
        $region148: #{tpu_custom_call.1} parent=133 // pred_check_branch
          %395 = sbr.rel (%p393) target = $region150
        $region149: #{tpu_custom_call.1} parent=133 // pred_region
          %vm396 = vcmask 122880
          %397 = vst.msk [vmem:[#allocation2] sm:$0x1] %vm396, -inf
          %398 = vst.msk [vmem:[#allocation2 + $0x1] sm:$0x1] %vm396, -inf
          %399 = vst.msk [vmem:[#allocation2 + $0x2] sm:$0x1] %vm396, -inf
          %400 = vst.msk [vmem:[#allocation2 + $0x3] sm:$0x1] %vm396, -inf
          %401 = vst.msk [vmem:[#allocation3] sm:$0x1] %vm396, 0.0
          %402 = vst.msk [vmem:[#allocation3 + $0x1] sm:$0x1] %vm396, 0.0
          %403 = vst.msk [vmem:[#allocation3 + $0x2] sm:$0x1] %vm396, 0.0
          %404 = vst.msk [vmem:[#allocation3 + $0x3] sm:$0x1] %vm396, 0.0
          %vm405 = vcmask 130048
          %406 = vst.msk [vmem:[#allocation4] sm:$0xff] %vm405, 0.0
          %407 = vst.msk [vmem:[#allocation4 + $0x8] sm:$0xff] %vm405, 0.0
          %408 = vst.msk [vmem:[#allocation4 + $0x10] sm:$0xff] %vm405, 0.0
          %409 = vst.msk [vmem:[#allocation4 + $0x18] sm:$0xff] %vm405, 0.0
          %v410 = vld [vmem:[%s345] sm:$0xff]
          %v411 = vld [vmem:[%s345 + $0x8] sm:$0xff]
          %v412 = vld [vmem:[%s345 + $0x10] sm:$0xff]
          %v413 = vld [vmem:[%s345 + $0x18] sm:$0xff]
          %v414 = vmul.f32 %v410, 0.35355338
          %v415 = vmul.f32 %v411, 0.35355338
          %v416 = vmul.f32 %v412, 0.35355338
          %v417 = vmul.f32 %v413, 0.35355338
          %418 = vst.msk [vmem:[#allocation5] sm:$0xff] %vm405, %v414
          %419 = vst.msk [vmem:[#allocation5 + $0x8] sm:$0xff] %vm405, %v415
          %420 = vst.msk [vmem:[#allocation5 + $0x10] sm:$0xff] %vm405, %v416
          %421 = vst.msk [vmem:[#allocation5 + $0x18] sm:$0xff] %vm405, %v417
        $region150: #{tpu_custom_call.1} parent=133 // pred_fallthru
          _
        %v422 = vld [vmem:[#allocation5] sm:$0xff]
        %v423 = vld [vmem:[#allocation5 + $0x8] sm:$0xff]
        %v424 = vld [vmem:[#allocation5 + $0x10] sm:$0xff]
        %v425 = vld [vmem:[#allocation5 + $0x18] sm:$0xff]
        %v426 = vld [vmem:[%s352] sm:$0xff]
        %v427 = vld [vmem:[%s352 + $0x8] sm:$0xff]
        %v428 = vld [vmem:[%s352 + $0x10] sm:$0xff]
        %v429 = vld [vmem:[%s352 + $0x18] sm:$0xff]
        %v430 = vld [vmem:[%s359] sm:$0xff]
        %v431 = vld [vmem:[%s359 + $0x8] sm:$0xff]
        %v432 = vld [vmem:[%s359 + $0x10] sm:$0xff]
        %v433 = vld [vmem:[%s359 + $0x18] sm:$0xff]
        %434 = vxpose.xlu0.b32.start [1/16] %v426, 128
        %435 = vxpose.xlu0.b32.cont [2/16] 0.0, 128
        %436 = vxpose.xlu0.b32.cont [3/16] 0.0, 128
        %437 = vxpose.xlu0.b32.cont [4/16] 0.0, 128
        %438 = vxpose.xlu0.b32.cont [5/16] 0.0, 128
        %439 = vxpose.xlu0.b32.cont [6/16] 0.0, 128
        %440 = vxpose.xlu0.b32.cont [7/16] 0.0, 128
        %441 = vxpose.xlu0.b32.cont [8/16] 0.0, 128
        %442 = vxpose.xlu0.b32.cont [9/16] 0.0, 128
        %443 = vxpose.xlu0.b32.cont [10/16] 0.0, 128
        %444 = vxpose.xlu0.b32.cont [11/16] 0.0, 128
        %445 = vxpose.xlu0.b32.cont [12/16] 0.0, 128
        %446 = vxpose.xlu0.b32.cont [13/16] 0.0, 128
        %447 = vxpose.xlu0.b32.cont [14/16] 0.0, 128
        %448 = vxpose.xlu0.b32.cont [15/16] 0.0, 128
        %449 = vxpose.xlu0.b32.end [16/16] 0.0, 128
        %v450 = vpop.trf.xlu0
        %v451 = vpop.trf.xlu0
        %v452 = vpop.trf.xlu0
        %v453 = vpop.trf.xlu0
        %v454 = vpop.trf.xlu0
        %v455 = vpop.trf.xlu0
        %v456 = vpop.trf.xlu0
        %v457 = vpop.trf.xlu0
        %v458 = vpop.trf.xlu0
        %v459 = vpop.trf.xlu0
        %v460 = vpop.trf.xlu0
        %v461 = vpop.trf.xlu0
        %v462 = vpop.trf.xlu0
        %v463 = vpop.trf.xlu0
        %v464 = vpop.trf.xlu0
        %v465 = vpop.trf.xlu0
        %vm466 = vcmask 64512
        %v468 = vsel %vm466, %v450, 0
        %v471 = vsel %vm466, %v451, 0
        %473 = vmatprep.subr.mxu0 0.0
        %474 = vmatpush1.msra.mxu0 0.0
        %475 = vmatprep.subr.mxu0 0.0
        %476 = vmatpush1.msra.mxu0 0.0
        %477 = vmatprep.subr.mxu0 0.0
        %478 = vmatpush1.msra.mxu0 0.0
        %479 = vmatprep.subr.mxu0 0.0
        %480 = vmatpush1.msra.mxu0 0.0
        %481 = vmatprep.subr.mxu0 0.0
        %482 = vmatpush1.msra.mxu0 0.0
        %483 = vmatprep.subr.mxu0 0.0
        %484 = vmatpush1.msra.mxu0 0.0
        %485 = vmatprep.subr.mxu0 0.0
        %486 = vmatpush1.msra.mxu0 0.0
        %487 = vmatprep.subr.mxu0 0.0
        %488 = vmatpush1.msra.mxu0 0.0
        %489 = vmatprep.subr.mxu0 0.0
        %490 = vmatpush1.msra.mxu0 0.0
        %491 = vmatprep.subr.mxu0 0.0
        %492 = vmatpush1.msra.mxu0 0.0
        %493 = vmatprep.subr.mxu0 0.0
        %494 = vmatpush1.msra.mxu0 0.0
        %495 = vmatprep.subr.mxu0 0.0
        %496 = vmatpush1.msra.mxu0 0.0
        %497 = vmatprep.subr.mxu0 0.0
        %498 = vmatpush1.msra.mxu0 0.0
        %499 = vmatprep.subr.mxu0 0.0
        %500 = vmatpush1.msra.mxu0 0.0
        %501 = vmatprep.subr.mxu0 0.0
        %502 = vmatpush1.msra.mxu0 0.0
        %503 = vmatprep.subr.mxu0 0.0
        %504 = vmatpush1.msra.mxu0 %v422
        %505 = vmatprep.subr.mxu0 0.0
        %506 = vmatpush2.msra.mxu0 0.0
        %507 = vmatprep.subr.mxu0 0.0
        %508 = vmatpush2.msra.mxu0 0.0
        %509 = vmatprep.subr.mxu0 0.0
        %510 = vmatpush2.msra.mxu0 0.0
        %511 = vmatprep.subr.mxu0 0.0
        %512 = vmatpush2.msra.mxu0 0.0
        %513 = vmatprep.subr.mxu0 0.0
        %514 = vmatpush2.msra.mxu0 0.0
        %515 = vmatprep.subr.mxu0 0.0
        %516 = vmatpush2.msra.mxu0 0.0
        %517 = vmatprep.subr.mxu0 0.0
        %518 = vmatpush2.msra.mxu0 0.0
        %519 = vmatprep.subr.mxu0 0.0
        %520 = vmatpush2.msra.mxu0 0.0
        %521 = vmatprep.subr.mxu0 0.0
        %522 = vmatpush2.msra.mxu0 0.0
        %523 = vmatprep.subr.mxu0 0.0
        %524 = vmatpush2.msra.mxu0 0.0
        %525 = vmatprep.subr.mxu0 0.0
        %526 = vmatpush2.msra.mxu0 0.0
        %527 = vmatprep.subr.mxu0 0.0
        %528 = vmatpush2.msra.mxu0 0.0
        %529 = vmatprep.subr.mxu0 0.0
        %530 = vmatpush2.msra.mxu0 0.0
        %531 = vmatprep.subr.mxu0 0.0
        %532 = vmatpush2.msra.mxu0 0.0
        %533 = vmatprep.subr.mxu0 0.0
        %534 = vmatpush2.msra.mxu0 0.0
        %535 = vmatprep.subr.mxu0 0.0
        %536 = vmatpush2.msra.mxu0 0.0
        %537 = vmatprep.mubr.f32.mxu0 0.0
        %538 = vmatmul.mubr.f32.gmra.mxu0 %v468
        %v539 = vpop.f32.mrf.mxu0
        %v540 = vadd.f32 0.0, %v539
        %v541 = vpop.f32.mrf.mxu0
        %542 = vmatprep.mubr.f32.mxu0 0.0
        %543 = vmatmul.mubr.f32.gmra.mxu0 %v471
        %v544 = vpop.f32.mrf.mxu0
        %v545 = vadd.f32 0.0, %v544
        %v546 = vpop.f32.mrf.mxu0
        %547 = vdwg.mxu0
        %548 = vxpose.xlu0.b32.start [1/16] %v427, 128
        %549 = vxpose.xlu0.b32.cont [2/16] 0.0, 128
        %550 = vxpose.xlu0.b32.cont [3/16] 0.0, 128
        %551 = vxpose.xlu0.b32.cont [4/16] 0.0, 128
        %552 = vxpose.xlu0.b32.cont [5/16] 0.0, 128
        %553 = vxpose.xlu0.b32.cont [6/16] 0.0, 128
        %554 = vxpose.xlu0.b32.cont [7/16] 0.0, 128
        %555 = vxpose.xlu0.b32.cont [8/16] 0.0, 128
        %556 = vxpose.xlu0.b32.cont [9/16] 0.0, 128
        %557 = vxpose.xlu0.b32.cont [10/16] 0.0, 128
        %558 = vxpose.xlu0.b32.cont [11/16] 0.0, 128
        %559 = vxpose.xlu0.b32.cont [12/16] 0.0, 128
        %560 = vxpose.xlu0.b32.cont [13/16] 0.0, 128
        %561 = vxpose.xlu0.b32.cont [14/16] 0.0, 128
        %562 = vxpose.xlu0.b32.cont [15/16] 0.0, 128
        %563 = vxpose.xlu0.b32.end [16/16] 0.0, 128
        %v564 = vpop.trf.xlu0
        %v565 = vpop.trf.xlu0
        %v566 = vpop.trf.xlu0
        %v567 = vpop.trf.xlu0
        %v568 = vpop.trf.xlu0
        %v569 = vpop.trf.xlu0
        %v570 = vpop.trf.xlu0
        %v571 = vpop.trf.xlu0
        %v572 = vpop.trf.xlu0
        %v573 = vpop.trf.xlu0
        %v574 = vpop.trf.xlu0
        %v575 = vpop.trf.xlu0
        %v576 = vpop.trf.xlu0
        %v577 = vpop.trf.xlu0
        %v578 = vpop.trf.xlu0
        %v579 = vpop.trf.xlu0
        %v581 = vsel %vm466, %v564, 0
        %v584 = vsel %vm466, %v565, 0
        %586 = vmatprep.subr.mxu0 0.0
        %587 = vmatpush1.msra.mxu0 0.0
        %588 = vmatprep.subr.mxu0 0.0
        %589 = vmatpush1.msra.mxu0 0.0
        %590 = vmatprep.subr.mxu0 0.0
        %591 = vmatpush1.msra.mxu0 0.0
        %592 = vmatprep.subr.mxu0 0.0
        %593 = vmatpush1.msra.mxu0 0.0
        %594 = vmatprep.subr.mxu0 0.0
        %595 = vmatpush1.msra.mxu0 0.0
        %596 = vmatprep.subr.mxu0 0.0
        %597 = vmatpush1.msra.mxu0 0.0
        %598 = vmatprep.subr.mxu0 0.0
        %599 = vmatpush1.msra.mxu0 0.0
        %600 = vmatprep.subr.mxu0 0.0
        %601 = vmatpush1.msra.mxu0 0.0
        %602 = vmatprep.subr.mxu0 0.0
        %603 = vmatpush1.msra.mxu0 0.0
        %604 = vmatprep.subr.mxu0 0.0
        %605 = vmatpush1.msra.mxu0 0.0
        %606 = vmatprep.subr.mxu0 0.0
        %607 = vmatpush1.msra.mxu0 0.0
        %608 = vmatprep.subr.mxu0 0.0
        %609 = vmatpush1.msra.mxu0 0.0
        %610 = vmatprep.subr.mxu0 0.0
        %611 = vmatpush1.msra.mxu0 0.0
        %612 = vmatprep.subr.mxu0 0.0
        %613 = vmatpush1.msra.mxu0 0.0
        %614 = vmatprep.subr.mxu0 0.0
        %615 = vmatpush1.msra.mxu0 0.0
        %616 = vmatprep.subr.mxu0 0.0
        %617 = vmatpush1.msra.mxu0 %v423
        %618 = vmatprep.subr.mxu0 0.0
        %619 = vmatpush2.msra.mxu0 0.0
        %620 = vmatprep.subr.mxu0 0.0
        %621 = vmatpush2.msra.mxu0 0.0
        %622 = vmatprep.subr.mxu0 0.0
        %623 = vmatpush2.msra.mxu0 0.0
        %624 = vmatprep.subr.mxu0 0.0
        %625 = vmatpush2.msra.mxu0 0.0
        %626 = vmatprep.subr.mxu0 0.0
        %627 = vmatpush2.msra.mxu0 0.0
        %628 = vmatprep.subr.mxu0 0.0
        %629 = vmatpush2.msra.mxu0 0.0
        %630 = vmatprep.subr.mxu0 0.0
        %631 = vmatpush2.msra.mxu0 0.0
        %632 = vmatprep.subr.mxu0 0.0
        %633 = vmatpush2.msra.mxu0 0.0
        %634 = vmatprep.subr.mxu0 0.0
        %635 = vmatpush2.msra.mxu0 0.0
        %636 = vmatprep.subr.mxu0 0.0
        %637 = vmatpush2.msra.mxu0 0.0
        %638 = vmatprep.subr.mxu0 0.0
        %639 = vmatpush2.msra.mxu0 0.0
        %640 = vmatprep.subr.mxu0 0.0
        %641 = vmatpush2.msra.mxu0 0.0
        %642 = vmatprep.subr.mxu0 0.0
        %643 = vmatpush2.msra.mxu0 0.0
        %644 = vmatprep.subr.mxu0 0.0
        %645 = vmatpush2.msra.mxu0 0.0
        %646 = vmatprep.subr.mxu0 0.0
        %647 = vmatpush2.msra.mxu0 0.0
        %648 = vmatprep.subr.mxu0 0.0
        %649 = vmatpush2.msra.mxu0 0.0
        %650 = vmatprep.mubr.f32.mxu0 0.0
        %651 = vmatmul.mubr.f32.gmra.mxu0 %v581
        %v652 = vpop.f32.mrf.mxu0
        %v653 = vadd.f32 0.0, %v652
        %v654 = vpop.f32.mrf.mxu0
        %655 = vmatprep.mubr.f32.mxu0 0.0
        %656 = vmatmul.mubr.f32.gmra.mxu0 %v584
        %v657 = vpop.f32.mrf.mxu0
        %v658 = vadd.f32 0.0, %v657
        %v659 = vpop.f32.mrf.mxu0
        %660 = vdwg.mxu0
        %661 = vxpose.xlu0.b32.start [1/16] %v428, 128
        %662 = vxpose.xlu0.b32.cont [2/16] 0.0, 128
        %663 = vxpose.xlu0.b32.cont [3/16] 0.0, 128
        %664 = vxpose.xlu0.b32.cont [4/16] 0.0, 128
        %665 = vxpose.xlu0.b32.cont [5/16] 0.0, 128
        %666 = vxpose.xlu0.b32.cont [6/16] 0.0, 128
        %667 = vxpose.xlu0.b32.cont [7/16] 0.0, 128
        %668 = vxpose.xlu0.b32.cont [8/16] 0.0, 128
        %669 = vxpose.xlu0.b32.cont [9/16] 0.0, 128
        %670 = vxpose.xlu0.b32.cont [10/16] 0.0, 128
        %671 = vxpose.xlu0.b32.cont [11/16] 0.0, 128
        %672 = vxpose.xlu0.b32.cont [12/16] 0.0, 128
        %673 = vxpose.xlu0.b32.cont [13/16] 0.0, 128
        %674 = vxpose.xlu0.b32.cont [14/16] 0.0, 128
        %675 = vxpose.xlu0.b32.cont [15/16] 0.0, 128
        %676 = vxpose.xlu0.b32.end [16/16] 0.0, 128
        %v677 = vpop.trf.xlu0
        %v678 = vpop.trf.xlu0
        %v679 = vpop.trf.xlu0
        %v680 = vpop.trf.xlu0
        %v681 = vpop.trf.xlu0
        %v682 = vpop.trf.xlu0
        %v683 = vpop.trf.xlu0
        %v684 = vpop.trf.xlu0
        %v685 = vpop.trf.xlu0
        %v686 = vpop.trf.xlu0
        %v687 = vpop.trf.xlu0
        %v688 = vpop.trf.xlu0
        %v689 = vpop.trf.xlu0
        %v690 = vpop.trf.xlu0
        %v691 = vpop.trf.xlu0
        %v692 = vpop.trf.xlu0
        %v694 = vsel %vm466, %v677, 0
        %v697 = vsel %vm466, %v678, 0
        %699 = vmatprep.subr.mxu0 0.0
        %700 = vmatpush1.msra.mxu0 0.0
        %701 = vmatprep.subr.mxu0 0.0
        %702 = vmatpush1.msra.mxu0 0.0
        %703 = vmatprep.subr.mxu0 0.0
        %704 = vmatpush1.msra.mxu0 0.0
        %705 = vmatprep.subr.mxu0 0.0
        %706 = vmatpush1.msra.mxu0 0.0
        %707 = vmatprep.subr.mxu0 0.0
        %708 = vmatpush1.msra.mxu0 0.0
        %709 = vmatprep.subr.mxu0 0.0
        %710 = vmatpush1.msra.mxu0 0.0
        %711 = vmatprep.subr.mxu0 0.0
        %712 = vmatpush1.msra.mxu0 0.0
        %713 = vmatprep.subr.mxu0 0.0
        %714 = vmatpush1.msra.mxu0 0.0
        %715 = vmatprep.subr.mxu0 0.0
        %716 = vmatpush1.msra.mxu0 0.0
        %717 = vmatprep.subr.mxu0 0.0
        %718 = vmatpush1.msra.mxu0 0.0
        %719 = vmatprep.subr.mxu0 0.0
        %720 = vmatpush1.msra.mxu0 0.0
        %721 = vmatprep.subr.mxu0 0.0
        %722 = vmatpush1.msra.mxu0 0.0
        %723 = vmatprep.subr.mxu0 0.0
        %724 = vmatpush1.msra.mxu0 0.0
        %725 = vmatprep.subr.mxu0 0.0
        %726 = vmatpush1.msra.mxu0 0.0
        %727 = vmatprep.subr.mxu0 0.0
        %728 = vmatpush1.msra.mxu0 0.0
        %729 = vmatprep.subr.mxu0 0.0
        %730 = vmatpush1.msra.mxu0 %v424
        %731 = vmatprep.subr.mxu0 0.0
        %732 = vmatpush2.msra.mxu0 0.0
        %733 = vmatprep.subr.mxu0 0.0
        %734 = vmatpush2.msra.mxu0 0.0
        %735 = vmatprep.subr.mxu0 0.0
        %736 = vmatpush2.msra.mxu0 0.0
        %737 = vmatprep.subr.mxu0 0.0
        %738 = vmatpush2.msra.mxu0 0.0
        %739 = vmatprep.subr.mxu0 0.0
        %740 = vmatpush2.msra.mxu0 0.0
        %741 = vmatprep.subr.mxu0 0.0
        %742 = vmatpush2.msra.mxu0 0.0
        %743 = vmatprep.subr.mxu0 0.0
        %744 = vmatpush2.msra.mxu0 0.0
        %745 = vmatprep.subr.mxu0 0.0
        %746 = vmatpush2.msra.mxu0 0.0
        %747 = vmatprep.subr.mxu0 0.0
        %748 = vmatpush2.msra.mxu0 0.0
        %749 = vmatprep.subr.mxu0 0.0
        %750 = vmatpush2.msra.mxu0 0.0
        %751 = vmatprep.subr.mxu0 0.0
        %752 = vmatpush2.msra.mxu0 0.0
        %753 = vmatprep.subr.mxu0 0.0
        %754 = vmatpush2.msra.mxu0 0.0
        %755 = vmatprep.subr.mxu0 0.0
        %756 = vmatpush2.msra.mxu0 0.0
        %757 = vmatprep.subr.mxu0 0.0
        %758 = vmatpush2.msra.mxu0 0.0
        %759 = vmatprep.subr.mxu0 0.0
        %760 = vmatpush2.msra.mxu0 0.0
        %761 = vmatprep.subr.mxu0 0.0
        %762 = vmatpush2.msra.mxu0 0.0
        %763 = vmatprep.mubr.f32.mxu0 0.0
        %764 = vmatmul.mubr.f32.gmra.mxu0 %v694
        %v765 = vpop.f32.mrf.mxu0
        %v766 = vadd.f32 0.0, %v765
        %v767 = vpop.f32.mrf.mxu0
        %768 = vmatprep.mubr.f32.mxu0 0.0
        %769 = vmatmul.mubr.f32.gmra.mxu0 %v697
        %v770 = vpop.f32.mrf.mxu0
        %v771 = vadd.f32 0.0, %v770
        %v772 = vpop.f32.mrf.mxu0
        %773 = vdwg.mxu0
        %774 = vxpose.xlu0.b32.start [1/16] %v429, 128
        %775 = vxpose.xlu0.b32.cont [2/16] 0.0, 128
        %776 = vxpose.xlu0.b32.cont [3/16] 0.0, 128
        %777 = vxpose.xlu0.b32.cont [4/16] 0.0, 128
        %778 = vxpose.xlu0.b32.cont [5/16] 0.0, 128
        %779 = vxpose.xlu0.b32.cont [6/16] 0.0, 128
        %780 = vxpose.xlu0.b32.cont [7/16] 0.0, 128
        %781 = vxpose.xlu0.b32.cont [8/16] 0.0, 128
        %782 = vxpose.xlu0.b32.cont [9/16] 0.0, 128
        %783 = vxpose.xlu0.b32.cont [10/16] 0.0, 128
        %784 = vxpose.xlu0.b32.cont [11/16] 0.0, 128
        %785 = vxpose.xlu0.b32.cont [12/16] 0.0, 128
        %786 = vxpose.xlu0.b32.cont [13/16] 0.0, 128
        %787 = vxpose.xlu0.b32.cont [14/16] 0.0, 128
        %788 = vxpose.xlu0.b32.cont [15/16] 0.0, 128
        %789 = vxpose.xlu0.b32.end [16/16] 0.0, 128
        %v790 = vpop.trf.xlu0
        %v791 = vpop.trf.xlu0
        %v792 = vpop.trf.xlu0
        %v793 = vpop.trf.xlu0
        %v794 = vpop.trf.xlu0
        %v795 = vpop.trf.xlu0
        %v796 = vpop.trf.xlu0
        %v797 = vpop.trf.xlu0
        %v798 = vpop.trf.xlu0
        %v799 = vpop.trf.xlu0
        %v800 = vpop.trf.xlu0
        %v801 = vpop.trf.xlu0
        %v802 = vpop.trf.xlu0
        %v803 = vpop.trf.xlu0
        %v804 = vpop.trf.xlu0
        %v805 = vpop.trf.xlu0
        %v807 = vsel %vm466, %v790, 0
        %v810 = vsel %vm466, %v791, 0
        %812 = vmatprep.subr.mxu0 0.0
        %813 = vmatpush1.msra.mxu0 0.0
        %814 = vmatprep.subr.mxu0 0.0
        %815 = vmatpush1.msra.mxu0 0.0
        %816 = vmatprep.subr.mxu0 0.0
        %817 = vmatpush1.msra.mxu0 0.0
        %818 = vmatprep.subr.mxu0 0.0
        %819 = vmatpush1.msra.mxu0 0.0
        %820 = vmatprep.subr.mxu0 0.0
        %821 = vmatpush1.msra.mxu0 0.0
        %822 = vmatprep.subr.mxu0 0.0
        %823 = vmatpush1.msra.mxu0 0.0
        %824 = vmatprep.subr.mxu0 0.0
        %825 = vmatpush1.msra.mxu0 0.0
        %826 = vmatprep.subr.mxu0 0.0
        %827 = vmatpush1.msra.mxu0 0.0
        %828 = vmatprep.subr.mxu0 0.0
        %829 = vmatpush1.msra.mxu0 0.0
        %830 = vmatprep.subr.mxu0 0.0
        %831 = vmatpush1.msra.mxu0 0.0
        %832 = vmatprep.subr.mxu0 0.0
        %833 = vmatpush1.msra.mxu0 0.0
        %834 = vmatprep.subr.mxu0 0.0
        %835 = vmatpush1.msra.mxu0 0.0
        %836 = vmatprep.subr.mxu0 0.0
        %837 = vmatpush1.msra.mxu0 0.0
        %838 = vmatprep.subr.mxu0 0.0
        %839 = vmatpush1.msra.mxu0 0.0
        %840 = vmatprep.subr.mxu0 0.0
        %841 = vmatpush1.msra.mxu0 0.0
        %842 = vmatprep.subr.mxu0 0.0
        %843 = vmatpush1.msra.mxu0 %v425
        %844 = vmatprep.subr.mxu0 0.0
        %845 = vmatpush2.msra.mxu0 0.0
        %846 = vmatprep.subr.mxu0 0.0
        %847 = vmatpush2.msra.mxu0 0.0
        %848 = vmatprep.subr.mxu0 0.0
        %849 = vmatpush2.msra.mxu0 0.0
        %850 = vmatprep.subr.mxu0 0.0
        %851 = vmatpush2.msra.mxu0 0.0
        %852 = vmatprep.subr.mxu0 0.0
        %853 = vmatpush2.msra.mxu0 0.0
        %854 = vmatprep.subr.mxu0 0.0
        %855 = vmatpush2.msra.mxu0 0.0
        %856 = vmatprep.subr.mxu0 0.0
        %857 = vmatpush2.msra.mxu0 0.0
        %858 = vmatprep.subr.mxu0 0.0
        %859 = vmatpush2.msra.mxu0 0.0
        %860 = vmatprep.subr.mxu0 0.0
        %861 = vmatpush2.msra.mxu0 0.0
        %862 = vmatprep.subr.mxu0 0.0
        %863 = vmatpush2.msra.mxu0 0.0
        %864 = vmatprep.subr.mxu0 0.0
        %865 = vmatpush2.msra.mxu0 0.0
        %866 = vmatprep.subr.mxu0 0.0
        %867 = vmatpush2.msra.mxu0 0.0
        %868 = vmatprep.subr.mxu0 0.0
        %869 = vmatpush2.msra.mxu0 0.0
        %870 = vmatprep.subr.mxu0 0.0
        %871 = vmatpush2.msra.mxu0 0.0
        %872 = vmatprep.subr.mxu0 0.0
        %873 = vmatpush2.msra.mxu0 0.0
        %874 = vmatprep.subr.mxu0 0.0
        %875 = vmatpush2.msra.mxu0 0.0
        %876 = vmatprep.mubr.f32.mxu0 0.0
        %877 = vmatmul.mubr.f32.gmra.mxu0 %v807
        %v878 = vpop.f32.mrf.mxu0
        %v879 = vadd.f32 0.0, %v878
        %v880 = vpop.f32.mrf.mxu0
        %881 = vmatprep.mubr.f32.mxu0 0.0
        %882 = vmatmul.mubr.f32.gmra.mxu0 %v810
        %v883 = vpop.f32.mrf.mxu0
        %v884 = vadd.f32 0.0, %v883
        %v885 = vpop.f32.mrf.mxu0
        %886 = vdwg.mxu0
        %v887 = vld [vmem:[#allocation2] sm:$0x1]
        %v888 = vld [vmem:[#allocation2 + $0x1] sm:$0x1]
        %v889 = vld [vmem:[#allocation2 + $0x2] sm:$0x1]
        %v890 = vld [vmem:[#allocation2 + $0x3] sm:$0x1]
        %vm891 = vcmask 130048
        %v892 = vsel %vm891, %v540, -inf
        %v893 = vsel %vm891, %v545, -inf
        %v894 = vmax.f32 %v892, %v893
        %v895 = vrot.slane %v894, 4
        %v896 = vmax.f32 %v894, %v895
        %v897 = vrot.slane %v896, 2
        %v898 = vmax.f32 %v896, %v897
        %v899 = vrot.slane %v898, 1
        %v900 = vmax.f32 %v898, %v899
        %v901 = vsel %vm891, %v653, -inf
        %v902 = vsel %vm891, %v658, -inf
        %v903 = vmax.f32 %v901, %v902
        %v904 = vrot.slane %v903, 4
        %v905 = vmax.f32 %v903, %v904
        %v906 = vrot.slane %v905, 2
        %v907 = vmax.f32 %v905, %v906
        %v908 = vrot.slane %v907, 1
        %v909 = vmax.f32 %v907, %v908
        %v910 = vsel %vm891, %v766, -inf
        %v911 = vsel %vm891, %v771, -inf
        %v912 = vmax.f32 %v910, %v911
        %v913 = vrot.slane %v912, 4
        %v914 = vmax.f32 %v912, %v913
        %v915 = vrot.slane %v914, 2
        %v916 = vmax.f32 %v914, %v915
        %v917 = vrot.slane %v916, 1
        %v918 = vmax.f32 %v916, %v917
        %v919 = vsel %vm891, %v879, -inf
        %v920 = vsel %vm891, %v884, -inf
        %v921 = vmax.f32 %v919, %v920
        %v922 = vrot.slane %v921, 4
        %v923 = vmax.f32 %v921, %v922
        %v924 = vrot.slane %v923, 2
        %v925 = vmax.f32 %v923, %v924
        %v926 = vrot.slane %v925, 1
        %v927 = vmax.f32 %v925, %v926
        %v928 = vmax.f32 %v887, %v900
        %v929 = vmax.f32 %v888, %v909
        %v930 = vmax.f32 %v889, %v918
        %v931 = vmax.f32 %v890, %v927
        %v932 = vsub.f32 %v887, %v928
        %v933 = vsub.f32 %v888, %v929
        %v934 = vsub.f32 %v889, %v930
        %v935 = vsub.f32 %v890, %v931
        %v936 = vmul.f32 %v932, 1.442695
        %v937 = vpow.pop %v936
        %v938 = vmul.f32 %v933, 1.442695
        %v939 = vpow.pop %v938
        %v940 = vmul.f32 %v934, 1.442695
        %v941 = vpow.pop %v940
        %v942 = vmul.f32 %v935, 1.442695
        %v943 = vpow.pop %v942
        %v948 = vlaneseq
        %v949 = vshrl.u32 %v948, 7
        %v950 = vsub.s32 0, %v949
        %v951 = vrot.slane %v928, %v950
        %v952 = vlaneseq
        %v953 = vshrl.u32 %v952, 7
        %v954 = vsub.s32 0, %v953
        %v955 = vrot.slane %v929, %v954
        %v956 = vlaneseq
        %v957 = vshrl.u32 %v956, 7
        %v958 = vsub.s32 0, %v957
        %v959 = vrot.slane %v930, %v958
        %v960 = vlaneseq
        %v961 = vshrl.u32 %v960, 7
        %v962 = vsub.s32 0, %v961
        %v963 = vrot.slane %v931, %v962
        %v968 = vsub.f32 %v540, %v951
        %v969 = vsub.f32 %v545, %v951
        %v970 = vsub.f32 %v653, %v955
        %v971 = vsub.f32 %v658, %v955
        %v972 = vsub.f32 %v766, %v959
        %v973 = vsub.f32 %v771, %v959
        %v974 = vsub.f32 %v879, %v963
        %v975 = vsub.f32 %v884, %v963
        %v976 = vmul.f32 %v968, 1.442695
        %v977 = vpow.pop %v976
        %v978 = vmul.f32 %v969, 1.442695
        %v979 = vpow.pop %v978
        %v980 = vmul.f32 %v970, 1.442695
        %v981 = vpow.pop %v980
        %v982 = vmul.f32 %v971, 1.442695
        %v983 = vpow.pop %v982
        %v984 = vmul.f32 %v972, 1.442695
        %v985 = vpow.pop %v984
        %v986 = vmul.f32 %v973, 1.442695
        %v987 = vpow.pop %v986
        %v988 = vmul.f32 %v974, 1.442695
        %v989 = vpow.pop %v988
        %v990 = vmul.f32 %v975, 1.442695
        %v991 = vpow.pop %v990
        %v992 = vld [vmem:[#allocation3] sm:$0x1]
        %v993 = vld [vmem:[#allocation3 + $0x1] sm:$0x1]
        %v994 = vld [vmem:[#allocation3 + $0x2] sm:$0x1]
        %v995 = vld [vmem:[#allocation3 + $0x3] sm:$0x1]
        %v996 = vmul.f32 %v937, %v992
        %v997 = vmul.f32 %v939, %v993
        %v998 = vmul.f32 %v941, %v994
        %v999 = vmul.f32 %v943, %v995
        %v1000 = vsel %vm891, %v977, 0.0
        %v1001 = vsel %vm891, %v979, 0.0
        %v1002 = vadd.f32 %v1000, %v1001
        %v1003 = vrot.slane %v1002, 4
        %v1004 = vadd.f32 %v1002, %v1003
        %v1005 = vrot.slane %v1004, 2
        %v1006 = vadd.f32 %v1004, %v1005
        %v1007 = vrot.slane %v1006, 1
        %v1008 = vadd.f32 %v1006, %v1007
        %v1009 = vsel %vm891, %v981, 0.0
        %v1010 = vsel %vm891, %v983, 0.0
        %v1011 = vadd.f32 %v1009, %v1010
        %v1012 = vrot.slane %v1011, 4
        %v1013 = vadd.f32 %v1011, %v1012
        %v1014 = vrot.slane %v1013, 2
        %v1015 = vadd.f32 %v1013, %v1014
        %v1016 = vrot.slane %v1015, 1
        %v1017 = vadd.f32 %v1015, %v1016
        %v1018 = vsel %vm891, %v985, 0.0
        %v1019 = vsel %vm891, %v987, 0.0
        %v1020 = vadd.f32 %v1018, %v1019
        %v1021 = vrot.slane %v1020, 4
        %v1022 = vadd.f32 %v1020, %v1021
        %v1023 = vrot.slane %v1022, 2
        %v1024 = vadd.f32 %v1022, %v1023
        %v1025 = vrot.slane %v1024, 1
        %v1026 = vadd.f32 %v1024, %v1025
        %v1027 = vsel %vm891, %v989, 0.0
        %v1028 = vsel %vm891, %v991, 0.0
        %v1029 = vadd.f32 %v1027, %v1028
        %v1030 = vrot.slane %v1029, 4
        %v1031 = vadd.f32 %v1029, %v1030
        %v1032 = vrot.slane %v1031, 2
        %v1033 = vadd.f32 %v1031, %v1032
        %v1034 = vrot.slane %v1033, 1
        %v1035 = vadd.f32 %v1033, %v1034
        %v1036 = vadd.f32 %v996, %v1008
        %v1037 = vadd.f32 %v997, %v1017
        %v1038 = vadd.f32 %v998, %v1026
        %v1039 = vadd.f32 %v999, %v1035
        %vm1040 = vcmask 122880
        %1041 = vst.msk [vmem:[#allocation3] sm:$0x1] %vm1040, %v1036
        %1042 = vst.msk [vmem:[#allocation3 + $0x1] sm:$0x1] %vm1040, %v1037
        %1043 = vst.msk [vmem:[#allocation3 + $0x2] sm:$0x1] %vm1040, %v1038
        %1044 = vst.msk [vmem:[#allocation3 + $0x3] sm:$0x1] %vm1040, %v1039
        %v1045 = vld [vmem:[#allocation4] sm:$0xff]
        %v1046 = vld [vmem:[#allocation4 + $0x8] sm:$0xff]
        %v1047 = vld [vmem:[#allocation4 + $0x10] sm:$0xff]
        %v1048 = vld [vmem:[#allocation4 + $0x18] sm:$0xff]
        %v1053 = vlaneseq
        %v1054 = vshrl.u32 %v1053, 7
        %v1055 = vsub.s32 0, %v1054
        %v1056 = vrot.slane %v937, %v1055
        %v1057 = vlaneseq
        %v1058 = vshrl.u32 %v1057, 7
        %v1059 = vsub.s32 0, %v1058
        %v1060 = vrot.slane %v939, %v1059
        %v1061 = vlaneseq
        %v1062 = vshrl.u32 %v1061, 7
        %v1063 = vsub.s32 0, %v1062
        %v1064 = vrot.slane %v941, %v1063
        %v1065 = vlaneseq
        %v1066 = vshrl.u32 %v1065, 7
        %v1067 = vsub.s32 0, %v1066
        %v1068 = vrot.slane %v943, %v1067
        %v1073 = vmul.f32 %v1056, %v1045
        %v1074 = vmul.f32 %v1060, %v1046
        %v1075 = vmul.f32 %v1064, %v1047
        %v1076 = vmul.f32 %v1068, %v1048
        %v1078 = vsel %vm891, %v430, 0
        %1080 = vmatprep.subr.mxu0 0.0
        %1081 = vmatpush1.msra.mxu0 0.0
        %1082 = vmatprep.subr.mxu0 0.0
        %1083 = vmatpush1.msra.mxu0 0.0
        %1084 = vmatprep.subr.mxu0 0.0
        %1085 = vmatpush1.msra.mxu0 0.0
        %1086 = vmatprep.subr.mxu0 0.0
        %1087 = vmatpush1.msra.mxu0 0.0
        %1088 = vmatprep.subr.mxu0 0.0
        %1089 = vmatpush1.msra.mxu0 0.0
        %1090 = vmatprep.subr.mxu0 0.0
        %1091 = vmatpush1.msra.mxu0 0.0
        %1092 = vmatprep.subr.mxu0 0.0
        %1093 = vmatpush1.msra.mxu0 0.0
        %1094 = vmatprep.subr.mxu0 0.0
        %1095 = vmatpush1.msra.mxu0 0.0
        %1096 = vmatprep.subr.mxu0 0.0
        %1097 = vmatpush1.msra.mxu0 0.0
        %1098 = vmatprep.subr.mxu0 0.0
        %1099 = vmatpush1.msra.mxu0 0.0
        %1100 = vmatprep.subr.mxu0 0.0
        %1101 = vmatpush1.msra.mxu0 0.0
        %1102 = vmatprep.subr.mxu0 0.0
        %1103 = vmatpush1.msra.mxu0 0.0
        %1104 = vmatprep.subr.mxu0 0.0
        %1105 = vmatpush1.msra.mxu0 0.0
        %1106 = vmatprep.subr.mxu0 0.0
        %1107 = vmatpush1.msra.mxu0 0.0
        %1108 = vmatprep.subr.mxu0 0.0
        %1109 = vmatpush1.msra.mxu0 %v979
        %1110 = vmatprep.subr.mxu0 0.0
        %1111 = vmatpush1.msra.mxu0 %v977
        %1112 = vmatprep.subr.mxu0 0.0
        %1113 = vmatpush2.msra.mxu0 0.0
        %1114 = vmatprep.subr.mxu0 0.0
        %1115 = vmatpush2.msra.mxu0 0.0
        %1116 = vmatprep.subr.mxu0 0.0
        %1117 = vmatpush2.msra.mxu0 0.0
        %1118 = vmatprep.subr.mxu0 0.0
        %1119 = vmatpush2.msra.mxu0 0.0
        %1120 = vmatprep.subr.mxu0 0.0
        %1121 = vmatpush2.msra.mxu0 0.0
        %1122 = vmatprep.subr.mxu0 0.0
        %1123 = vmatpush2.msra.mxu0 0.0
        %1124 = vmatprep.subr.mxu0 0.0
        %1125 = vmatpush2.msra.mxu0 0.0
        %1126 = vmatprep.subr.mxu0 0.0
        %1127 = vmatpush2.msra.mxu0 0.0
        %1128 = vmatprep.subr.mxu0 0.0
        %1129 = vmatpush2.msra.mxu0 0.0
        %1130 = vmatprep.subr.mxu0 0.0
        %1131 = vmatpush2.msra.mxu0 0.0
        %1132 = vmatprep.subr.mxu0 0.0
        %1133 = vmatpush2.msra.mxu0 0.0
        %1134 = vmatprep.subr.mxu0 0.0
        %1135 = vmatpush2.msra.mxu0 0.0
        %1136 = vmatprep.subr.mxu0 0.0
        %1137 = vmatpush2.msra.mxu0 0.0
        %1138 = vmatprep.subr.mxu0 0.0
        %1139 = vmatpush2.msra.mxu0 0.0
        %1140 = vmatprep.subr.mxu0 0.0
        %1141 = vmatpush2.msra.mxu0 0.0
        %1142 = vmatprep.subr.mxu0 0.0
        %1143 = vmatpush2.msra.mxu0 0.0
        %1144 = vmatprep.mubr.f32.mxu0 0.0
        %1145 = vmatmul.mubr.f32.gmra.mxu0 %v1078
        %v1146 = vpop.f32.mrf.mxu0
        %v1147 = vadd.f32 0.0, %v1146
        %v1148 = vpop.f32.mrf.mxu0
        %1149 = vdwg.mxu0
        %v1151 = vsel %vm891, %v431, 0
        %1153 = vmatprep.subr.mxu0 0.0
        %1154 = vmatpush1.msra.mxu0 0.0
        %1155 = vmatprep.subr.mxu0 0.0
        %1156 = vmatpush1.msra.mxu0 0.0
        %1157 = vmatprep.subr.mxu0 0.0
        %1158 = vmatpush1.msra.mxu0 0.0
        %1159 = vmatprep.subr.mxu0 0.0
        %1160 = vmatpush1.msra.mxu0 0.0
        %1161 = vmatprep.subr.mxu0 0.0
        %1162 = vmatpush1.msra.mxu0 0.0
        %1163 = vmatprep.subr.mxu0 0.0
        %1164 = vmatpush1.msra.mxu0 0.0
        %1165 = vmatprep.subr.mxu0 0.0
        %1166 = vmatpush1.msra.mxu0 0.0
        %1167 = vmatprep.subr.mxu0 0.0
        %1168 = vmatpush1.msra.mxu0 0.0
        %1169 = vmatprep.subr.mxu0 0.0
        %1170 = vmatpush1.msra.mxu0 0.0
        %1171 = vmatprep.subr.mxu0 0.0
        %1172 = vmatpush1.msra.mxu0 0.0
        %1173 = vmatprep.subr.mxu0 0.0
        %1174 = vmatpush1.msra.mxu0 0.0
        %1175 = vmatprep.subr.mxu0 0.0
        %1176 = vmatpush1.msra.mxu0 0.0
        %1177 = vmatprep.subr.mxu0 0.0
        %1178 = vmatpush1.msra.mxu0 0.0
        %1179 = vmatprep.subr.mxu0 0.0
        %1180 = vmatpush1.msra.mxu0 0.0
        %1181 = vmatprep.subr.mxu0 0.0
        %1182 = vmatpush1.msra.mxu0 %v983
        %1183 = vmatprep.subr.mxu0 0.0
        %1184 = vmatpush1.msra.mxu0 %v981
        %1185 = vmatprep.subr.mxu0 0.0
        %1186 = vmatpush2.msra.mxu0 0.0
        %1187 = vmatprep.subr.mxu0 0.0
        %1188 = vmatpush2.msra.mxu0 0.0
        %1189 = vmatprep.subr.mxu0 0.0
        %1190 = vmatpush2.msra.mxu0 0.0
        %1191 = vmatprep.subr.mxu0 0.0
        %1192 = vmatpush2.msra.mxu0 0.0
        %1193 = vmatprep.subr.mxu0 0.0
        %1194 = vmatpush2.msra.mxu0 0.0
        %1195 = vmatprep.subr.mxu0 0.0
        %1196 = vmatpush2.msra.mxu0 0.0
        %1197 = vmatprep.subr.mxu0 0.0
        %1198 = vmatpush2.msra.mxu0 0.0
        %1199 = vmatprep.subr.mxu0 0.0
        %1200 = vmatpush2.msra.mxu0 0.0
        %1201 = vmatprep.subr.mxu0 0.0
        %1202 = vmatpush2.msra.mxu0 0.0
        %1203 = vmatprep.subr.mxu0 0.0
        %1204 = vmatpush2.msra.mxu0 0.0
        %1205 = vmatprep.subr.mxu0 0.0
        %1206 = vmatpush2.msra.mxu0 0.0
        %1207 = vmatprep.subr.mxu0 0.0
        %1208 = vmatpush2.msra.mxu0 0.0
        %1209 = vmatprep.subr.mxu0 0.0
        %1210 = vmatpush2.msra.mxu0 0.0
        %1211 = vmatprep.subr.mxu0 0.0
        %1212 = vmatpush2.msra.mxu0 0.0
        %1213 = vmatprep.subr.mxu0 0.0
        %1214 = vmatpush2.msra.mxu0 0.0
        %1215 = vmatprep.subr.mxu0 0.0
        %1216 = vmatpush2.msra.mxu0 0.0
        %1217 = vmatprep.mubr.f32.mxu0 0.0
        %1218 = vmatmul.mubr.f32.gmra.mxu0 %v1151
        %v1219 = vpop.f32.mrf.mxu0
        %v1220 = vadd.f32 0.0, %v1219
        %v1221 = vpop.f32.mrf.mxu0
        %1222 = vdwg.mxu0
        %v1224 = vsel %vm891, %v432, 0
        %1226 = vmatprep.subr.mxu0 0.0
        %1227 = vmatpush1.msra.mxu0 0.0
        %1228 = vmatprep.subr.mxu0 0.0
        %1229 = vmatpush1.msra.mxu0 0.0
        %1230 = vmatprep.subr.mxu0 0.0
        %1231 = vmatpush1.msra.mxu0 0.0
        %1232 = vmatprep.subr.mxu0 0.0
        %1233 = vmatpush1.msra.mxu0 0.0
        %1234 = vmatprep.subr.mxu0 0.0
        %1235 = vmatpush1.msra.mxu0 0.0
        %1236 = vmatprep.subr.mxu0 0.0
        %1237 = vmatpush1.msra.mxu0 0.0
        %1238 = vmatprep.subr.mxu0 0.0
        %1239 = vmatpush1.msra.mxu0 0.0
        %1240 = vmatprep.subr.mxu0 0.0
        %1241 = vmatpush1.msra.mxu0 0.0
        %1242 = vmatprep.subr.mxu0 0.0
        %1243 = vmatpush1.msra.mxu0 0.0
        %1244 = vmatprep.subr.mxu0 0.0
        %1245 = vmatpush1.msra.mxu0 0.0
        %1246 = vmatprep.subr.mxu0 0.0
        %1247 = vmatpush1.msra.mxu0 0.0
        %1248 = vmatprep.subr.mxu0 0.0
        %1249 = vmatpush1.msra.mxu0 0.0
        %1250 = vmatprep.subr.mxu0 0.0
        %1251 = vmatpush1.msra.mxu0 0.0
        %1252 = vmatprep.subr.mxu0 0.0
        %1253 = vmatpush1.msra.mxu0 0.0
        %1254 = vmatprep.subr.mxu0 0.0
        %1255 = vmatpush1.msra.mxu0 %v987
        %1256 = vmatprep.subr.mxu0 0.0
        %1257 = vmatpush1.msra.mxu0 %v985
        %1258 = vmatprep.subr.mxu0 0.0
        %1259 = vmatpush2.msra.mxu0 0.0
        %1260 = vmatprep.subr.mxu0 0.0
        %1261 = vmatpush2.msra.mxu0 0.0
        %1262 = vmatprep.subr.mxu0 0.0
        %1263 = vmatpush2.msra.mxu0 0.0
        %1264 = vmatprep.subr.mxu0 0.0
        %1265 = vmatpush2.msra.mxu0 0.0
        %1266 = vmatprep.subr.mxu0 0.0
        %1267 = vmatpush2.msra.mxu0 0.0
        %1268 = vmatprep.subr.mxu0 0.0
        %1269 = vmatpush2.msra.mxu0 0.0
        %1270 = vmatprep.subr.mxu0 0.0
        %1271 = vmatpush2.msra.mxu0 0.0
        %1272 = vmatprep.subr.mxu0 0.0
        %1273 = vmatpush2.msra.mxu0 0.0
        %1274 = vmatprep.subr.mxu0 0.0
        %1275 = vmatpush2.msra.mxu0 0.0
        %1276 = vmatprep.subr.mxu0 0.0
        %1277 = vmatpush2.msra.mxu0 0.0
        %1278 = vmatprep.subr.mxu0 0.0
        %1279 = vmatpush2.msra.mxu0 0.0
        %1280 = vmatprep.subr.mxu0 0.0
        %1281 = vmatpush2.msra.mxu0 0.0
        %1282 = vmatprep.subr.mxu0 0.0
        %1283 = vmatpush2.msra.mxu0 0.0
        %1284 = vmatprep.subr.mxu0 0.0
        %1285 = vmatpush2.msra.mxu0 0.0
        %1286 = vmatprep.subr.mxu0 0.0
        %1287 = vmatpush2.msra.mxu0 0.0
        %1288 = vmatprep.subr.mxu0 0.0
        %1289 = vmatpush2.msra.mxu0 0.0
        %1290 = vmatprep.mubr.f32.mxu0 0.0
        %1291 = vmatmul.mubr.f32.gmra.mxu0 %v1224
        %v1292 = vpop.f32.mrf.mxu0
        %v1293 = vadd.f32 0.0, %v1292
        %v1294 = vpop.f32.mrf.mxu0
        %1295 = vdwg.mxu0
        %v1297 = vsel %vm891, %v433, 0
        %1299 = vmatprep.subr.mxu0 0.0
        %1300 = vmatpush1.msra.mxu0 0.0
        %1301 = vmatprep.subr.mxu0 0.0
        %1302 = vmatpush1.msra.mxu0 0.0
        %1303 = vmatprep.subr.mxu0 0.0
        %1304 = vmatpush1.msra.mxu0 0.0
        %1305 = vmatprep.subr.mxu0 0.0
        %1306 = vmatpush1.msra.mxu0 0.0
        %1307 = vmatprep.subr.mxu0 0.0
        %1308 = vmatpush1.msra.mxu0 0.0
        %1309 = vmatprep.subr.mxu0 0.0
        %1310 = vmatpush1.msra.mxu0 0.0
        %1311 = vmatprep.subr.mxu0 0.0
        %1312 = vmatpush1.msra.mxu0 0.0
        %1313 = vmatprep.subr.mxu0 0.0
        %1314 = vmatpush1.msra.mxu0 0.0
        %1315 = vmatprep.subr.mxu0 0.0
        %1316 = vmatpush1.msra.mxu0 0.0
        %1317 = vmatprep.subr.mxu0 0.0
        %1318 = vmatpush1.msra.mxu0 0.0
        %1319 = vmatprep.subr.mxu0 0.0
        %1320 = vmatpush1.msra.mxu0 0.0
        %1321 = vmatprep.subr.mxu0 0.0
        %1322 = vmatpush1.msra.mxu0 0.0
        %1323 = vmatprep.subr.mxu0 0.0
        %1324 = vmatpush1.msra.mxu0 0.0
        %1325 = vmatprep.subr.mxu0 0.0
        %1326 = vmatpush1.msra.mxu0 0.0
        %1327 = vmatprep.subr.mxu0 0.0
        %1328 = vmatpush1.msra.mxu0 %v991
        %1329 = vmatprep.subr.mxu0 0.0
        %1330 = vmatpush1.msra.mxu0 %v989
        %1331 = vmatprep.subr.mxu0 0.0
        %1332 = vmatpush2.msra.mxu0 0.0
        %1333 = vmatprep.subr.mxu0 0.0
        %1334 = vmatpush2.msra.mxu0 0.0
        %1335 = vmatprep.subr.mxu0 0.0
        %1336 = vmatpush2.msra.mxu0 0.0
        %1337 = vmatprep.subr.mxu0 0.0
        %1338 = vmatpush2.msra.mxu0 0.0
        %1339 = vmatprep.subr.mxu0 0.0
        %1340 = vmatpush2.msra.mxu0 0.0
        %1341 = vmatprep.subr.mxu0 0.0
        %1342 = vmatpush2.msra.mxu0 0.0
        %1343 = vmatprep.subr.mxu0 0.0
        %1344 = vmatpush2.msra.mxu0 0.0
        %1345 = vmatprep.subr.mxu0 0.0
        %1346 = vmatpush2.msra.mxu0 0.0
        %1347 = vmatprep.subr.mxu0 0.0
        %1348 = vmatpush2.msra.mxu0 0.0
        %1349 = vmatprep.subr.mxu0 0.0
        %1350 = vmatpush2.msra.mxu0 0.0
        %1351 = vmatprep.subr.mxu0 0.0
        %1352 = vmatpush2.msra.mxu0 0.0
        %1353 = vmatprep.subr.mxu0 0.0
        %1354 = vmatpush2.msra.mxu0 0.0
        %1355 = vmatprep.subr.mxu0 0.0
        %1356 = vmatpush2.msra.mxu0 0.0
        %1357 = vmatprep.subr.mxu0 0.0
        %1358 = vmatpush2.msra.mxu0 0.0
        %1359 = vmatprep.subr.mxu0 0.0
        %1360 = vmatpush2.msra.mxu0 0.0
        %1361 = vmatprep.subr.mxu0 0.0
        %1362 = vmatpush2.msra.mxu0 0.0
        %1363 = vmatprep.mubr.f32.mxu0 0.0
        %1364 = vmatmul.mubr.f32.gmra.mxu0 %v1297
        %v1365 = vpop.f32.mrf.mxu0
        %v1366 = vadd.f32 0.0, %v1365
        %v1367 = vpop.f32.mrf.mxu0
        %1368 = vdwg.mxu0
        %v1369 = vadd.f32 %v1073, %v1147
        %v1370 = vadd.f32 %v1074, %v1220
        %v1371 = vadd.f32 %v1075, %v1293
        %v1372 = vadd.f32 %v1076, %v1366
        %1373 = vst.msk [vmem:[#allocation4] sm:$0xff] %vm891, %v1369
        %1374 = vst.msk [vmem:[#allocation4 + $0x8] sm:$0xff] %vm891, %v1370
        %1375 = vst.msk [vmem:[#allocation4 + $0x10] sm:$0xff] %vm891, %v1371
        %1376 = vst.msk [vmem:[#allocation4 + $0x18] sm:$0xff] %vm891, %v1372
        %1377 = vst.msk [vmem:[#allocation2] sm:$0x1] %vm1040, %v928
        %1378 = vst.msk [vmem:[#allocation2 + $0x1] sm:$0x1] %vm1040, %v929
        %1379 = vst.msk [vmem:[#allocation2 + $0x2] sm:$0x1] %vm1040, %v930
        %1380 = vst.msk [vmem:[#allocation2 + $0x3] sm:$0x1] %vm1040, %v931
        // Predicated region
        $region151: #{tpu_custom_call.1} parent=133 // pred_check
          %p1381 = pneg %p392
        $region152: #{tpu_custom_call.1} parent=133 // pred_check_branch
          %1383 = sbr.rel (%p1381) target = $region154
        $region153: #{tpu_custom_call.1} parent=133 // pred_region
          %v1384 = vld [vmem:[#allocation3] sm:$0x1]
          %v1385 = vld [vmem:[#allocation3 + $0x1] sm:$0x1]
          %v1386 = vld [vmem:[#allocation3 + $0x2] sm:$0x1]
          %v1387 = vld [vmem:[#allocation3 + $0x3] sm:$0x1]
          %v1388 = vrcp.pop %v1384
          %v1389 = vrcp.pop %v1385
          %v1390 = vrcp.pop %v1386
          %v1391 = vrcp.pop %v1387
          %v1392 = vmul.f32 %v1384, %v1388
          %v1393 = vmul.f32 %v1385, %v1389
          %v1394 = vmul.f32 %v1386, %v1390
          %v1395 = vmul.f32 %v1387, %v1391
          %v1396 = vsub.f32 2.0, %v1392
          %v1397 = vsub.f32 2.0, %v1393
          %v1398 = vsub.f32 2.0, %v1394
          %v1399 = vsub.f32 2.0, %v1395
          %v1400 = vmul.f32 %v1388, %v1396
          %v1401 = vmul.f32 %v1389, %v1397
          %v1402 = vmul.f32 %v1390, %v1398
          %v1403 = vmul.f32 %v1391, %v1399
          %v1404 = vmul.f32 %v1384, %v1400
          %v1405 = vmul.f32 %v1385, %v1401
          %v1406 = vmul.f32 %v1386, %v1402
          %v1407 = vmul.f32 %v1387, %v1403
          %v1408 = vsub.f32 2.0, %v1404
          %v1409 = vsub.f32 2.0, %v1405
          %v1410 = vsub.f32 2.0, %v1406
          %v1411 = vsub.f32 2.0, %v1407
          %v1412 = vmul.f32 %v1400, %v1408
          %v1413 = vmul.f32 %v1401, %v1409
          %v1414 = vmul.f32 %v1402, %v1410
          %v1415 = vmul.f32 %v1403, %v1411
          %v1416 = vld [vmem:[#allocation4] sm:$0xff]
          %v1417 = vld [vmem:[#allocation4 + $0x8] sm:$0xff]
          %v1418 = vld [vmem:[#allocation4 + $0x10] sm:$0xff]
          %v1419 = vld [vmem:[#allocation4 + $0x18] sm:$0xff]
          %v1424 = vlaneseq
          %v1425 = vshrl.u32 %v1424, 7
          %v1426 = vsub.s32 0, %v1425
          %v1427 = vrot.slane %v1412, %v1426
          %v1428 = vlaneseq
          %v1429 = vshrl.u32 %v1428, 7
          %v1430 = vsub.s32 0, %v1429
          %v1431 = vrot.slane %v1413, %v1430
          %v1432 = vlaneseq
          %v1433 = vshrl.u32 %v1432, 7
          %v1434 = vsub.s32 0, %v1433
          %v1435 = vrot.slane %v1414, %v1434
          %v1436 = vlaneseq
          %v1437 = vshrl.u32 %v1436, 7
          %v1438 = vsub.s32 0, %v1437
          %v1439 = vrot.slane %v1415, %v1438
          %v1444 = vmul.f32 %v1416, %v1427
          %v1445 = vmul.f32 %v1417, %v1431
          %v1446 = vmul.f32 %v1418, %v1435
          %v1447 = vmul.f32 %v1419, %v1439
          %1448 = vst.msk [vmem:[%s387] sm:$0xff] %vm891, %v1444
          %1449 = vst.msk [vmem:[%s387 + $0x8] sm:$0xff] %vm891, %v1445
          %1450 = vst.msk [vmem:[%s387 + $0x10] sm:$0xff] %vm891, %v1446
          %1451 = vst.msk [vmem:[%s387 + $0x18] sm:$0xff] %vm891, %v1447
        $region154: #{tpu_custom_call.1} parent=133 // pred_fallthru
          _
        %s1452 = sand.u32 %s130, 1
        %s1453 = scalar_lea.sflag [#allocation10], %s1452
        %s1454 = sand.u32 %s130, 1
        %s1455 = smul.addr %s1454, 32
        %s1456 = scalar_lea.vmem [#allocation9], %s1455
        // Predicated region
        $region155: #{tpu_custom_call.1} parent=133 // pred_check
          %p1457 = pneg %p140
        $region156: #{tpu_custom_call.1} parent=133 // pred_check_branch
          %1459 = sbr.rel (%p1457) target = $region158
        $region157: #{tpu_custom_call.1} parent=133 // pred_region
          %s1460 = smul.u32 4, %s22
          %s1462 = ssub.s32 512, 512
          %1463 = vsyncadd %s1453, %s1462
          %s1464 = sadd.s32 %s23, %s1460
          %s1465 = smul.addr %s1464, 128
          %s1466 = scalar_lea.hbm %s3, %s1465
          %s1467 = sshll.u32 %s1456, 4
          %s1468 = int_to_ptr.vmem [resolvable:$true] %s1467
          %1473 = dma.vmem_to_hbm [thread:$0]  %s1468, 512, %s1466, %s1453, 128, 128, 8
        $region158: #{tpu_custom_call.1} parent=133 // pred_fallthru
          _
      $region134: #{tpu_custom_call.1} parent=5 // pred_fallthru
        _
      %p1474 = scmp.le.s32.totalorder 2, %s12
      // Predicated region
      $region159: #{tpu_custom_call.1} parent=5 // pred_check
        %p1475 = pneg %p1474
      $region160: #{tpu_custom_call.1} parent=5 // pred_check_branch
        %1477 = sbr.rel (%p1475) target = $region162
      $region161: #{tpu_custom_call.1} parent=5 // pred_region
        %s1478 = ssub.s32 %s12, 2
        // Predicated region
        $region163: #{tpu_custom_call.1} parent=161 // pred_check
          %p1479 = pneg %p146
        $region164: #{tpu_custom_call.1} parent=161 // pred_check_branch
          %1481 = sbr.rel (%p1479) target = $region166
        $region165: #{tpu_custom_call.1} parent=161 // pred_region
          %s1482 = sand.u32 %s131, 1
          %s1483 = scalar_lea.sflag [#allocation10], %s1482
          %s1484 = sand.u32 %s131, 1
          %s1485 = smul.addr %s1484, 32
          %s1486 = scalar_lea.vmem [#allocation9], %s1485
          %1487 = dma.done %s1483, 512
        $region166: #{tpu_custom_call.1} parent=161 // pred_fallthru
          _
      $region162: #{tpu_custom_call.1} parent=5 // pred_fallthru
        _
    $region6: #{tpu_custom_call.1} parent=1 // loop_footer
      %s16 = sadd.s32 1, %s12
    $region7: #{tpu_custom_call.1} parent=1 // loop_footer_branch
      %11 = sbr.rel target = $region3
    $region8: #{tpu_custom_call.1} parent=1 // loop_exit
      _
    %1488 = vsyncpa [#allocation10], 1
    %s1489 = scalar_lea.sflag [#allocation10], 1
    %1490 = vsyncpa %s1489, 1

</llo_original>
